<compile_context>
chip_gen: v7x
topology: tpu7x:2x2x1
jax: 0.10.0
libtpu: 0.0.40
codegen_flags: <defaults>
</compile_context>

<pallas_src>
import functools

import numpy as np
import jax
import jax.numpy as jnp
from jax.experimental import pallas as pl
from jax.experimental.pallas import tpu as pltpu

LN_EPS = 1e-5  # torch.nn.LayerNorm default eps


def _layer_norm(x, gamma, beta):
    # x: (..., d_model), gamma/beta: (1, d_model); biased variance like PyTorch.
    mean = jnp.mean(x, axis=-1, keepdims=True)
    var = jnp.mean((x - mean) ** 2, axis=-1, keepdims=True)
    inv = jax.lax.rsqrt(var + LN_EPS)
    return (x - mean) * inv * gamma + beta


def mha_kernel(n_head, d_k, d_v,
               q_ref, k_ref, v_ref,
               wq_ref, wk_ref, wv_ref,
               w1_ref, b1_ref, w2_ref, b2_ref,
               gamma_ref, beta_ref,
               out_ref, attn_ref, ctx_ref):
    tb, L, d_model = q_ref.shape

    # ---- fused QKV projections: one wide matmul per projection (MXU-friendly) ----
    xq = q_ref[...]                                   # (tb, L, d_model) bf16
    xq2 = xq.reshape(tb * L, d_model)
    xk2 = k_ref[...].reshape(tb * L, d_model)
    xv2 = v_ref[...].reshape(tb * L, d_model)

    # 1/temperature is pre-folded into wq (host side), so no per-score divide.
    q_all = jnp.dot(xq2, wq_ref[...], preferred_element_type=jnp.float32)
    k_all = jnp.dot(xk2, wk_ref[...], preferred_element_type=jnp.float32)
    v_all = jnp.dot(xv2, wv_ref[...], preferred_element_type=jnp.float32)

    q_all = q_all.reshape(tb, L, n_head * d_k).astype(jnp.bfloat16)
    k_all = k_all.reshape(tb, L, n_head * d_k).astype(jnp.bfloat16)
    v_all = v_all.reshape(tb, L, n_head * d_v).astype(jnp.bfloat16)

    # ---- per-head scaled dot-product attention, batched over tb, no kh.T ----
    for h in range(n_head):
        qh = q_all[:, :, h * d_k:(h + 1) * d_k]        # static lane slices
        kh = k_all[:, :, h * d_k:(h + 1) * d_k]
        vh = v_all[:, :, h * d_v:(h + 1) * d_v]

        s = jnp.einsum('bqd,bkd->bqk', qh, kh,
                       preferred_element_type=jnp.float32)   # (tb, L, L), f32
        s = s - jnp.max(s, axis=-1, keepdims=True)
        e = jnp.exp(s)
        p = e * pl.reciprocal(jnp.sum(e, axis=-1, keepdims=True), approx=True)
        # TODO(synk): attention dropout omitted (eval-mode identity).
        attn_ref[h] = p
        # TODO(synk): attn writeback could be made optional / bf16 + lane-dense
        # for large L to cut HBM traffic; kept f32 to match module semantics.
        ctx_ref[:, :, h * d_v:(h + 1) * d_v] = jnp.einsum(
            'bqk,bkd->bqd', p.astype(jnp.bfloat16), vh,
            preferred_element_type=jnp.float32)

    gamma = gamma_ref[...]   # (1, d_model), f32
    beta = beta_ref[...]

    # X = LayerNorm(attention_output + residual)   (f32 math)
    X = _layer_norm(ctx_ref[...] + xq.astype(jnp.float32), gamma, beta)

    # MLP: linear2(relu(linear1(X))) — bf16 operands, f32 accumulation.
    X2 = X.reshape(tb * L, d_model)
    h1 = jnp.maximum(
        jnp.dot(X2.astype(jnp.bfloat16), w1_ref[...],
                preferred_element_type=jnp.float32) + b1_ref[...], 0.0)
    o = jnp.dot(h1.astype(jnp.bfloat16), w2_ref[...],
                preferred_element_type=jnp.float32) + b2_ref[...]
    # TODO(synk): output dropout omitted (eval-mode identity).

    out_ref[...] = _layer_norm(o.reshape(tb, L, d_model) + X,
                               gamma, beta).astype(out_ref.dtype)


def multi_head_attention(q, k, v, params, n_head, d_k, d_v, *, batch_block=8):
    b, L, d_model = q.shape
    assert n_head * d_v == d_model, "residual add requires n_head*d_v == d_model"
    temp = float(np.power(d_k, 0.5)) + 1e-6

    # batch block per grid step (amortizes per-step overhead, fills MXU rows).
    tb = min(batch_block, b)
    while b % tb:
        tb -= 1
    grid_b = b // tb
    # NOTE: on v7x (2 TCs) prefer grid_b >= 2 so both cores get work.

    bf16 = jnp.bfloat16
    qb, kb, vb = q.astype(bf16), k.astype(bf16), v.astype(bf16)
    wq = (params["wq_cat"] * (1.0 / temp)).astype(bf16)   # fold 1/temperature into Wq
    wk = params["wk_cat"].astype(bf16)
    wv = params["wv_cat"].astype(bf16)
    w1 = params["w1t"].astype(bf16)
    w2 = params["w2t"].astype(bf16)

    kernel = functools.partial(mha_kernel, n_head, d_k, d_v)

    def full(shape):
        n = len(shape)
        return pl.BlockSpec(shape, lambda i, _n=n: (0,) * _n)

    qkv_spec = pl.BlockSpec((tb, L, d_model), lambda i: (i, 0, 0))

    # TODO(synk): for very large shapes, set vmem_limit_bytes / single-buffer
    # the constant-index weight specs and tile attn over query rows (v7x 64MiB).
    out, attn = pl.pallas_call(
        kernel,
        out_shape=(
            jax.ShapeDtypeStruct((b, L, d_model), jnp.float32),
            jax.ShapeDtypeStruct((n_head, b, L, L), jnp.float32),
        ),
        grid=(grid_b,),
        in_specs=[
            qkv_spec, qkv_spec, qkv_spec,
            full(wq.shape),            # (d_model, n_head*d_k)
            full(wk.shape),            # (d_model, n_head*d_k)
            full(wv.shape),            # (d_model, n_head*d_v)
            full((d_model, d_model)),  # w1t
            full((1, d_model)),        # b1
            full((d_model, d_model)),  # w2t
            full((1, d_model)),        # b2
            full((1, d_model)),        # gamma
            full((1, d_model)),        # beta
        ],
        out_specs=(
            pl.BlockSpec((tb, L, d_model), lambda i: (i, 0, 0)),
            pl.BlockSpec((n_head, tb, L, L), lambda i: (0, i, 0, 0)),
        ),
        scratch_shapes=[pltpu.VMEM((tb, L, n_head * d_v), jnp.float32)],
        compiler_params=pltpu.CompilerParams(dimension_semantics=("parallel",)),
    )(qb, kb, vb, wq, wk, wv, w1, params["b1"], w2, params["b2"],
      params["gamma"], params["beta"])

    # (n_head, b, L, L) -> (n_head*b, L, L), matching torch's head-major stacking.
    attn = attn.reshape(n_head * b, L, L)
    return out, attn


def init_params(key, n_head, d_model, d_k, d_v):
    """Deterministic synthetic parameters matching the module's __init__ shapes."""
    ks = jax.random.split(key, 7)
    std_qk = float(np.sqrt(2.0 / (d_model + d_k)))
    std_v = float(np.sqrt(2.0 / (d_model + d_v)))
    std_x = float(np.sqrt(2.0 / (d_model + d_model)))  # xavier_normal
    bound = 1.0 / float(np.sqrt(d_model))

    def fused_w(kk, d_out, std):
        # torch nn.Linear weight is (out_features, in_features) = (n_head*d_out, d_model).
        # Store transposed: (d_model, n_head*d_out); column block [h*d_out:(h+1)*d_out]
        # is head h's right-multiply matrix.
        W = jax.random.normal(kk, (n_head * d_out, d_model), jnp.float32) * std
        return W.T

    w1 = jax.random.normal(ks[3], (d_model, d_model), jnp.float32) * std_x
    w2 = jax.random.normal(ks[5], (d_model, d_model), jnp.float32) * std_x
    return {
        "wq_cat": fused_w(ks[0], d_k, std_qk),
        "wk_cat": fused_w(ks[1], d_k, std_qk),
        "wv_cat": fused_w(ks[2], d_v, std_v),
        "w1t": w1.T,  # stored transposed so kernel does X @ w1t
        "b1": jax.random.uniform(ks[4], (1, d_model), jnp.float32, -bound, bound),
        "w2t": w2.T,
        "b2": jax.random.uniform(ks[6], (1, d_model), jnp.float32, -bound, bound),
        "gamma": jnp.ones((1, d_model), jnp.float32),
        "beta": jnp.zeros((1, d_model), jnp.float32),
    }


def reference(q, k, v, p, n_head, d_k, d_v):
    """Pure-JAX f32 reference mirroring the PyTorch forward (eval mode, mask=None)."""
    b, L, d_model = q.shape
    temp = float(np.power(d_k, 0.5)) + 1e-6

    def split_heads(x, w, d):
        y = x @ w                                      # (b, L, n_head*d)
        return y.reshape(b, L, n_head, d).transpose(2, 0, 1, 3)  # (h, b, L, d)

    Q = split_heads(q, p["wq_cat"], d_k)
    K = split_heads(k, p["wk_cat"], d_k)
    V = split_heads(v, p["wv_cat"], d_v)

    scores = jnp.einsum("hbqd,hbkd->hbqk", Q, K) / temp
    attn = jax.nn.softmax(scores, axis=-1)
    ctx = jnp.einsum("hbqk,hbkd->hbqd", attn, V)       # (h, b, L, d_v)
    ctx = jnp.transpose(ctx, (1, 2, 0, 3)).reshape(b, L, n_head * d_v)

    X = _layer_norm(ctx + q, p["gamma"], p["beta"])
    h1 = jnp.maximum(X @ p["w1t"] + p["b1"], 0.0)
    o = h1 @ p["w2t"] + p["b2"]
    out = _layer_norm(o + X, p["gamma"], p["beta"])
    return out, attn.reshape(n_head * b, L, L)


if __name__ == "__main__":
    n_head, d_model, d_k, d_v = 4, 32, 8, 8
    batch, seq = 2, 8

    key = jax.random.PRNGKey(0)
    kq, kk, kv, kp = jax.random.split(key, 4)
    q = jax.random.normal(kq, (batch, seq, d_model), jnp.float32)
    k = jax.random.normal(kk, (batch, seq, d_model), jnp.float32)
    v = jax.random.normal(kv, (batch, seq, d_model), jnp.float32)
    params = init_params(kp, n_head, d_model, d_k, d_v)

    out, attn = multi_head_attention(q, k, v, params, n_head, d_k, d_v)
    out, attn = jax.block_until_ready((out, attn))

    ref_out, ref_attn = reference(q, k, v, params, n_head, d_k, d_v)
    np.testing.assert_allclose(np.asarray(out), np.asarray(ref_out), rtol=2e-2, atol=2e-2)
    np.testing.assert_allclose(np.asarray(attn), np.asarray(ref_attn), rtol=2e-2, atol=2e-2)

    print("KERNEL_OK")
</pallas_src>

<mosaic_0001>
module attributes {stable_mosaic.version = 11 : i64} {
  func.func @mha_kernel(%arg0: i32, %arg1: memref<2x8x32xbf16, #tpu.memory_space<vmem>>, %arg2: memref<2x8x32xbf16, #tpu.memory_space<vmem>>, %arg3: memref<2x8x32xbf16, #tpu.memory_space<vmem>>, %arg4: memref<32x32xbf16, #tpu.memory_space<vmem>>, %arg5: memref<32x32xbf16, #tpu.memory_space<vmem>>, %arg6: memref<32x32xbf16, #tpu.memory_space<vmem>>, %arg7: memref<32x32xbf16, #tpu.memory_space<vmem>>, %arg8: memref<1x32xf32, #tpu.memory_space<vmem>>, %arg9: memref<32x32xbf16, #tpu.memory_space<vmem>>, %arg10: memref<1x32xf32, #tpu.memory_space<vmem>>, %arg11: memref<1x32xf32, #tpu.memory_space<vmem>>, %arg12: memref<1x32xf32, #tpu.memory_space<vmem>>, %arg13: memref<2x8x32xf32, #tpu.memory_space<vmem>>, %arg14: memref<4x2x8x8xf32, #tpu.memory_space<vmem>>, %arg15: memref<2x8x32xf32, #tpu.memory_space<vmem>>) attributes {dimension_semantics = [#tpu.dimension_semantics<parallel>], iteration_bounds = array<i64: 1>, scalar_prefetch = 0 : i64, scratch_operands = 1 : i64, tpu.core_type = #tpu.core_type<tc>, window_params = [{transform_indices = @transform_0, window_bounds = array<i64: 2, 8, 32>}, {transform_indices = @transform_1, window_bounds = array<i64: 2, 8, 32>}, {transform_indices = @transform_2, window_bounds = array<i64: 2, 8, 32>}, {pipeline_mode = #tpu.pipeline_mode<synchronous>, transform_indices = @transform_3, window_bounds = array<i64: 32, 32>}, {pipeline_mode = #tpu.pipeline_mode<synchronous>, transform_indices = @transform_4, window_bounds = array<i64: 32, 32>}, {pipeline_mode = #tpu.pipeline_mode<synchronous>, transform_indices = @transform_5, window_bounds = array<i64: 32, 32>}, {pipeline_mode = #tpu.pipeline_mode<synchronous>, transform_indices = @transform_6, window_bounds = array<i64: 32, 32>}, {pipeline_mode = #tpu.pipeline_mode<synchronous>, transform_indices = @transform_7, window_bounds = array<i64: 1, 32>}, {pipeline_mode = #tpu.pipeline_mode<synchronous>, transform_indices = @transform_8, window_bounds = array<i64: 32, 32>}, {pipeline_mode = #tpu.pipeline_mode<synchronous>, transform_indices = @transform_9, window_bounds = array<i64: 1, 32>}, {pipeline_mode = #tpu.pipeline_mode<synchronous>, transform_indices = @transform_10, window_bounds = array<i64: 1, 32>}, {pipeline_mode = #tpu.pipeline_mode<synchronous>, transform_indices = @transform_11, window_bounds = array<i64: 1, 32>}, {transform_indices = @transform_12, window_bounds = array<i64: 2, 8, 32>}, {transform_indices = @transform_13, window_bounds = array<i64: 4, 2, 8, 8>}]} {
    %c0 = arith.constant 0 : index
    %c0_0 = arith.constant 0 : index
    %c0_1 = arith.constant 0 : index
    %0 = vector.load %arg1[%c0, %c0_0, %c0_1] : memref<2x8x32xbf16, #tpu.memory_space<vmem>>, vector<2x8x32xbf16>
    %1 = vector.shape_cast %0 : vector<2x8x32xbf16> to vector<16x32xbf16>
    %c0_2 = arith.constant 0 : index
    %c0_3 = arith.constant 0 : index
    %c0_4 = arith.constant 0 : index
    %2 = vector.load %arg2[%c0_2, %c0_3, %c0_4] : memref<2x8x32xbf16, #tpu.memory_space<vmem>>, vector<2x8x32xbf16>
    %3 = vector.shape_cast %2 : vector<2x8x32xbf16> to vector<16x32xbf16>
    %c0_5 = arith.constant 0 : index
    %c0_6 = arith.constant 0 : index
    %c0_7 = arith.constant 0 : index
    %4 = vector.load %arg3[%c0_5, %c0_6, %c0_7] : memref<2x8x32xbf16, #tpu.memory_space<vmem>>, vector<2x8x32xbf16>
    %5 = vector.shape_cast %4 : vector<2x8x32xbf16> to vector<16x32xbf16>
    %c0_8 = arith.constant 0 : index
    %c0_9 = arith.constant 0 : index
    %6 = vector.load %arg4[%c0_8, %c0_9] : memref<32x32xbf16, #tpu.memory_space<vmem>>, vector<32x32xbf16>
    %cst = arith.constant dense<0.000000e+00> : vector<16x32xf32>
    %7 = tpu.matmul %1, %6, %cst {dimension_numbers = #tpu.dot_dimension_numbers<[1], [0], [0], [1], [0, 0, 1, 1], [], []>} : vector<16x32xbf16>, vector<32x32xbf16>, vector<16x32xf32> -> vector<16x32xf32>
    %c0_10 = arith.constant 0 : index
    %c0_11 = arith.constant 0 : index
    %8 = vector.load %arg5[%c0_10, %c0_11] : memref<32x32xbf16, #tpu.memory_space<vmem>>, vector<32x32xbf16>
    %cst_12 = arith.constant dense<0.000000e+00> : vector<16x32xf32>
    %9 = tpu.matmul %3, %8, %cst_12 {dimension_numbers = #tpu.dot_dimension_numbers<[1], [0], [0], [1], [0, 0, 1, 1], [], []>} : vector<16x32xbf16>, vector<32x32xbf16>, vector<16x32xf32> -> vector<16x32xf32>
    %c0_13 = arith.constant 0 : index
    %c0_14 = arith.constant 0 : index
    %10 = vector.load %arg6[%c0_13, %c0_14] : memref<32x32xbf16, #tpu.memory_space<vmem>>, vector<32x32xbf16>
    %cst_15 = arith.constant dense<0.000000e+00> : vector<16x32xf32>
    %11 = tpu.matmul %5, %10, %cst_15 {dimension_numbers = #tpu.dot_dimension_numbers<[1], [0], [0], [1], [0, 0, 1, 1], [], []>} : vector<16x32xbf16>, vector<32x32xbf16>, vector<16x32xf32> -> vector<16x32xf32>
    %12 = vector.shape_cast %7 : vector<16x32xf32> to vector<2x8x32xf32>
    %13 = arith.truncf %12 : vector<2x8x32xf32> to vector<2x8x32xbf16>
    %14 = vector.shape_cast %9 : vector<16x32xf32> to vector<2x8x32xf32>
    %15 = arith.truncf %14 : vector<2x8x32xf32> to vector<2x8x32xbf16>
    %16 = vector.shape_cast %11 : vector<16x32xf32> to vector<2x8x32xf32>
    %17 = arith.truncf %16 : vector<2x8x32xf32> to vector<2x8x32xbf16>
    %18 = vector.extract_strided_slice %13 {offsets = [0, 0, 0], sizes = [2, 8, 8], strides = [1, 1, 1]} : vector<2x8x32xbf16> to vector<2x8x8xbf16>
    %19 = vector.extract_strided_slice %15 {offsets = [0, 0, 0], sizes = [2, 8, 8], strides = [1, 1, 1]} : vector<2x8x32xbf16> to vector<2x8x8xbf16>
    %20 = vector.extract_strided_slice %17 {offsets = [0, 0, 0], sizes = [2, 8, 8], strides = [1, 1, 1]} : vector<2x8x32xbf16> to vector<2x8x8xbf16>
    "tpu.trace_start"() <{level = 10 : i32, message = "bqd,bkd->bqk"}> : () -> ()
    %cst_16 = arith.constant dense<0.000000e+00> : vector<2x8x8xf32>
    %21 = tpu.matmul %18, %19, %cst_16 {dimension_numbers = #tpu.dot_dimension_numbers<[2], [2], [1], [1], [0, 0, 0, 1, 1, 1], [0], [0]>} : vector<2x8x8xbf16>, vector<2x8x8xbf16>, vector<2x8x8xf32> -> vector<2x8x8xf32>
    "tpu.trace_stop"() : () -> ()
    %cst_17 = arith.constant dense<0xFF800000> : vector<2x8xf32>
    %22 = vector.multi_reduction <maximumf>, %21, %cst_17 [2] : vector<2x8x8xf32> to vector<2x8xf32>
    %23 = vector.shape_cast %22 : vector<2x8xf32> to vector<2x8x1xf32>
    %24 = vector.broadcast %23 : vector<2x8x1xf32> to vector<2x8x8xf32>
    %25 = arith.subf %21, %24 : vector<2x8x8xf32>
    %26 = math.exp %25 : vector<2x8x8xf32>
    %cst_18 = arith.constant dense<0.000000e+00> : vector<2x8xf32>
    %27 = vector.multi_reduction <add>, %26, %cst_18 [2] : vector<2x8x8xf32> to vector<2x8xf32>
    %28 = vector.shape_cast %27 : vector<2x8xf32> to vector<2x8x1xf32>
    %29 = tpu.reciprocal %28 {approx = true} : vector<2x8x1xf32> -> vector<2x8x1xf32>
    %30 = vector.broadcast %29 : vector<2x8x1xf32> to vector<2x8x8xf32>
    %31 = arith.mulf %26, %30 : vector<2x8x8xf32>
    %c0_19 = arith.constant 0 : index
    %c0_20 = arith.constant 0 : index
    %c0_21 = arith.constant 0 : index
    %c0_22 = arith.constant 0 : index
    %32 = vector.load %arg14[%c0_19, %c0_20, %c0_21, %c0_22] : memref<4x2x8x8xf32, #tpu.memory_space<vmem>>, vector<1x2x8x8xf32>
    %33 = vector.shape_cast %32 : vector<1x2x8x8xf32> to vector<2x8x8xf32>
    %34 = vector.shape_cast %31 : vector<2x8x8xf32> to vector<1x2x8x8xf32>
    tpu.vector_store %arg14[%c0_19, %c0_20, %c0_21, %c0_22], %34 {strides = array<i32>} : memref<4x2x8x8xf32, #tpu.memory_space<vmem>>, vector<1x2x8x8xf32>,
    %35 = arith.truncf %31 : vector<2x8x8xf32> to vector<2x8x8xbf16>
    "tpu.trace_start"() <{level = 10 : i32, message = "bqk,bkd->bqd"}> : () -> ()
    %cst_23 = arith.constant dense<0.000000e+00> : vector<2x8x8xf32>
    %36 = tpu.matmul %35, %20, %cst_23 {dimension_numbers = #tpu.dot_dimension_numbers<[2], [1], [1], [2], [0, 0, 0, 1, 1, 2], [0], [0]>} : vector<2x8x8xbf16>, vector<2x8x8xbf16>, vector<2x8x8xf32> -> vector<2x8x8xf32>
    "tpu.trace_stop"() : () -> ()
    %c0_24 = arith.constant 0 : index
    %c0_25 = arith.constant 0 : index
    %c0_26 = arith.constant 0 : index
    %37 = vector.load %arg15[%c0_24, %c0_25, %c0_26] : memref<2x8x32xf32, #tpu.memory_space<vmem>>, vector<2x8x8xf32>
    tpu.vector_store %arg15[%c0_24, %c0_25, %c0_26], %36 {strides = array<i32>} : memref<2x8x32xf32, #tpu.memory_space<vmem>>, vector<2x8x8xf32>,
    %38 = vector.extract_strided_slice %13 {offsets = [0, 0, 8], sizes = [2, 8, 8], strides = [1, 1, 1]} : vector<2x8x32xbf16> to vector<2x8x8xbf16>
    %39 = vector.extract_strided_slice %15 {offsets = [0, 0, 8], sizes = [2, 8, 8], strides = [1, 1, 1]} : vector<2x8x32xbf16> to vector<2x8x8xbf16>
    %40 = vector.extract_strided_slice %17 {offsets = [0, 0, 8], sizes = [2, 8, 8], strides = [1, 1, 1]} : vector<2x8x32xbf16> to vector<2x8x8xbf16>
    "tpu.trace_start"() <{level = 10 : i32, message = "bqd,bkd->bqk"}> : () -> ()
    %cst_27 = arith.constant dense<0.000000e+00> : vector<2x8x8xf32>
    %41 = tpu.matmul %38, %39, %cst_27 {dimension_numbers = #tpu.dot_dimension_numbers<[2], [2], [1], [1], [0, 0, 0, 1, 1, 1], [0], [0]>} : vector<2x8x8xbf16>, vector<2x8x8xbf16>, vector<2x8x8xf32> -> vector<2x8x8xf32>
    "tpu.trace_stop"() : () -> ()
    %cst_28 = arith.constant dense<0xFF800000> : vector<2x8xf32>
    %42 = vector.multi_reduction <maximumf>, %41, %cst_28 [2] : vector<2x8x8xf32> to vector<2x8xf32>
    %43 = vector.shape_cast %42 : vector<2x8xf32> to vector<2x8x1xf32>
    %44 = vector.broadcast %43 : vector<2x8x1xf32> to vector<2x8x8xf32>
    %45 = arith.subf %41, %44 : vector<2x8x8xf32>
    %46 = math.exp %45 : vector<2x8x8xf32>
    %cst_29 = arith.constant dense<0.000000e+00> : vector<2x8xf32>
    %47 = vector.multi_reduction <add>, %46, %cst_29 [2] : vector<2x8x8xf32> to vector<2x8xf32>
    %48 = vector.shape_cast %47 : vector<2x8xf32> to vector<2x8x1xf32>
    %49 = tpu.reciprocal %48 {approx = true} : vector<2x8x1xf32> -> vector<2x8x1xf32>
    %50 = vector.broadcast %49 : vector<2x8x1xf32> to vector<2x8x8xf32>
    %51 = arith.mulf %46, %50 : vector<2x8x8xf32>
    %c1 = arith.constant 1 : index
    %c0_30 = arith.constant 0 : index
    %c0_31 = arith.constant 0 : index
    %c0_32 = arith.constant 0 : index
    %52 = vector.load %arg14[%c1, %c0_30, %c0_31, %c0_32] : memref<4x2x8x8xf32, #tpu.memory_space<vmem>>, vector<1x2x8x8xf32>
    %53 = vector.shape_cast %52 : vector<1x2x8x8xf32> to vector<2x8x8xf32>
    %54 = vector.shape_cast %51 : vector<2x8x8xf32> to vector<1x2x8x8xf32>
    tpu.vector_store %arg14[%c1, %c0_30, %c0_31, %c0_32], %54 {strides = array<i32>} : memref<4x2x8x8xf32, #tpu.memory_space<vmem>>, vector<1x2x8x8xf32>,
    %55 = arith.truncf %51 : vector<2x8x8xf32> to vector<2x8x8xbf16>
    "tpu.trace_start"() <{level = 10 : i32, message = "bqk,bkd->bqd"}> : () -> ()
    %cst_33 = arith.constant dense<0.000000e+00> : vector<2x8x8xf32>
    %56 = tpu.matmul %55, %40, %cst_33 {dimension_numbers = #tpu.dot_dimension_numbers<[2], [1], [1], [2], [0, 0, 0, 1, 1, 2], [0], [0]>} : vector<2x8x8xbf16>, vector<2x8x8xbf16>, vector<2x8x8xf32> -> vector<2x8x8xf32>
    "tpu.trace_stop"() : () -> ()
    %c0_34 = arith.constant 0 : index
    %c0_35 = arith.constant 0 : index
    %c8 = arith.constant 8 : index
    %57 = vector.load %arg15[%c0_34, %c0_35, %c8] : memref<2x8x32xf32, #tpu.memory_space<vmem>>, vector<2x8x8xf32>
    tpu.vector_store %arg15[%c0_34, %c0_35, %c8], %56 {strides = array<i32>} : memref<2x8x32xf32, #tpu.memory_space<vmem>>, vector<2x8x8xf32>,
    %58 = vector.extract_strided_slice %13 {offsets = [0, 0, 16], sizes = [2, 8, 8], strides = [1, 1, 1]} : vector<2x8x32xbf16> to vector<2x8x8xbf16>
    %59 = vector.extract_strided_slice %15 {offsets = [0, 0, 16], sizes = [2, 8, 8], strides = [1, 1, 1]} : vector<2x8x32xbf16> to vector<2x8x8xbf16>
    %60 = vector.extract_strided_slice %17 {offsets = [0, 0, 16], sizes = [2, 8, 8], strides = [1, 1, 1]} : vector<2x8x32xbf16> to vector<2x8x8xbf16>
    "tpu.trace_start"() <{level = 10 : i32, message = "bqd,bkd->bqk"}> : () -> ()
    %cst_36 = arith.constant dense<0.000000e+00> : vector<2x8x8xf32>
    %61 = tpu.matmul %58, %59, %cst_36 {dimension_numbers = #tpu.dot_dimension_numbers<[2], [2], [1], [1], [0, 0, 0, 1, 1, 1], [0], [0]>} : vector<2x8x8xbf16>, vector<2x8x8xbf16>, vector<2x8x8xf32> -> vector<2x8x8xf32>
    "tpu.trace_stop"() : () -> ()
    %cst_37 = arith.constant dense<0xFF800000> : vector<2x8xf32>
    %62 = vector.multi_reduction <maximumf>, %61, %cst_37 [2] : vector<2x8x8xf32> to vector<2x8xf32>
    %63 = vector.shape_cast %62 : vector<2x8xf32> to vector<2x8x1xf32>
    %64 = vector.broadcast %63 : vector<2x8x1xf32> to vector<2x8x8xf32>
    %65 = arith.subf %61, %64 : vector<2x8x8xf32>
    %66 = math.exp %65 : vector<2x8x8xf32>
    %cst_38 = arith.constant dense<0.000000e+00> : vector<2x8xf32>
    %67 = vector.multi_reduction <add>, %66, %cst_38 [2] : vector<2x8x8xf32> to vector<2x8xf32>
    %68 = vector.shape_cast %67 : vector<2x8xf32> to vector<2x8x1xf32>
    %69 = tpu.reciprocal %68 {approx = true} : vector<2x8x1xf32> -> vector<2x8x1xf32>
    %70 = vector.broadcast %69 : vector<2x8x1xf32> to vector<2x8x8xf32>
    %71 = arith.mulf %66, %70 : vector<2x8x8xf32>
    %c2 = arith.constant 2 : index
    %c0_39 = arith.constant 0 : index
    %c0_40 = arith.constant 0 : index
    %c0_41 = arith.constant 0 : index
    %72 = vector.load %arg14[%c2, %c0_39, %c0_40, %c0_41] : memref<4x2x8x8xf32, #tpu.memory_space<vmem>>, vector<1x2x8x8xf32>
    %73 = vector.shape_cast %72 : vector<1x2x8x8xf32> to vector<2x8x8xf32>
    %74 = vector.shape_cast %71 : vector<2x8x8xf32> to vector<1x2x8x8xf32>
    tpu.vector_store %arg14[%c2, %c0_39, %c0_40, %c0_41], %74 {strides = array<i32>} : memref<4x2x8x8xf32, #tpu.memory_space<vmem>>, vector<1x2x8x8xf32>,
    %75 = arith.truncf %71 : vector<2x8x8xf32> to vector<2x8x8xbf16>
    "tpu.trace_start"() <{level = 10 : i32, message = "bqk,bkd->bqd"}> : () -> ()
    %cst_42 = arith.constant dense<0.000000e+00> : vector<2x8x8xf32>
    %76 = tpu.matmul %75, %60, %cst_42 {dimension_numbers = #tpu.dot_dimension_numbers<[2], [1], [1], [2], [0, 0, 0, 1, 1, 2], [0], [0]>} : vector<2x8x8xbf16>, vector<2x8x8xbf16>, vector<2x8x8xf32> -> vector<2x8x8xf32>
    "tpu.trace_stop"() : () -> ()
    %c0_43 = arith.constant 0 : index
    %c0_44 = arith.constant 0 : index
    %c16 = arith.constant 16 : index
    %77 = vector.load %arg15[%c0_43, %c0_44, %c16] : memref<2x8x32xf32, #tpu.memory_space<vmem>>, vector<2x8x8xf32>
    tpu.vector_store %arg15[%c0_43, %c0_44, %c16], %76 {strides = array<i32>} : memref<2x8x32xf32, #tpu.memory_space<vmem>>, vector<2x8x8xf32>,
    %78 = vector.extract_strided_slice %13 {offsets = [0, 0, 24], sizes = [2, 8, 8], strides = [1, 1, 1]} : vector<2x8x32xbf16> to vector<2x8x8xbf16>
    %79 = vector.extract_strided_slice %15 {offsets = [0, 0, 24], sizes = [2, 8, 8], strides = [1, 1, 1]} : vector<2x8x32xbf16> to vector<2x8x8xbf16>
    %80 = vector.extract_strided_slice %17 {offsets = [0, 0, 24], sizes = [2, 8, 8], strides = [1, 1, 1]} : vector<2x8x32xbf16> to vector<2x8x8xbf16>
    "tpu.trace_start"() <{level = 10 : i32, message = "bqd,bkd->bqk"}> : () -> ()
    %cst_45 = arith.constant dense<0.000000e+00> : vector<2x8x8xf32>
    %81 = tpu.matmul %78, %79, %cst_45 {dimension_numbers = #tpu.dot_dimension_numbers<[2], [2], [1], [1], [0, 0, 0, 1, 1, 1], [0], [0]>} : vector<2x8x8xbf16>, vector<2x8x8xbf16>, vector<2x8x8xf32> -> vector<2x8x8xf32>
    "tpu.trace_stop"() : () -> ()
    %cst_46 = arith.constant dense<0xFF800000> : vector<2x8xf32>
    %82 = vector.multi_reduction <maximumf>, %81, %cst_46 [2] : vector<2x8x8xf32> to vector<2x8xf32>
    %83 = vector.shape_cast %82 : vector<2x8xf32> to vector<2x8x1xf32>
    %84 = vector.broadcast %83 : vector<2x8x1xf32> to vector<2x8x8xf32>
    %85 = arith.subf %81, %84 : vector<2x8x8xf32>
    %86 = math.exp %85 : vector<2x8x8xf32>
    %cst_47 = arith.constant dense<0.000000e+00> : vector<2x8xf32>
    %87 = vector.multi_reduction <add>, %86, %cst_47 [2] : vector<2x8x8xf32> to vector<2x8xf32>
    %88 = vector.shape_cast %87 : vector<2x8xf32> to vector<2x8x1xf32>
    %89 = tpu.reciprocal %88 {approx = true} : vector<2x8x1xf32> -> vector<2x8x1xf32>
    %90 = vector.broadcast %89 : vector<2x8x1xf32> to vector<2x8x8xf32>
    %91 = arith.mulf %86, %90 : vector<2x8x8xf32>
    %c3 = arith.constant 3 : index
    %c0_48 = arith.constant 0 : index
    %c0_49 = arith.constant 0 : index
    %c0_50 = arith.constant 0 : index
    %92 = vector.load %arg14[%c3, %c0_48, %c0_49, %c0_50] : memref<4x2x8x8xf32, #tpu.memory_space<vmem>>, vector<1x2x8x8xf32>
    %93 = vector.shape_cast %92 : vector<1x2x8x8xf32> to vector<2x8x8xf32>
    %94 = vector.shape_cast %91 : vector<2x8x8xf32> to vector<1x2x8x8xf32>
    tpu.vector_store %arg14[%c3, %c0_48, %c0_49, %c0_50], %94 {strides = array<i32>} : memref<4x2x8x8xf32, #tpu.memory_space<vmem>>, vector<1x2x8x8xf32>,
    %95 = arith.truncf %91 : vector<2x8x8xf32> to vector<2x8x8xbf16>
    "tpu.trace_start"() <{level = 10 : i32, message = "bqk,bkd->bqd"}> : () -> ()
    %cst_51 = arith.constant dense<0.000000e+00> : vector<2x8x8xf32>
    %96 = tpu.matmul %95, %80, %cst_51 {dimension_numbers = #tpu.dot_dimension_numbers<[2], [1], [1], [2], [0, 0, 0, 1, 1, 2], [0], [0]>} : vector<2x8x8xbf16>, vector<2x8x8xbf16>, vector<2x8x8xf32> -> vector<2x8x8xf32>
    "tpu.trace_stop"() : () -> ()
    %c0_52 = arith.constant 0 : index
    %c0_53 = arith.constant 0 : index
    %c24 = arith.constant 24 : index
    %97 = vector.load %arg15[%c0_52, %c0_53, %c24] : memref<2x8x32xf32, #tpu.memory_space<vmem>>, vector<2x8x8xf32>
    tpu.vector_store %arg15[%c0_52, %c0_53, %c24], %96 {strides = array<i32>} : memref<2x8x32xf32, #tpu.memory_space<vmem>>, vector<2x8x8xf32>,
    %c0_54 = arith.constant 0 : index
    %c0_55 = arith.constant 0 : index
    %98 = vector.load %arg11[%c0_54, %c0_55] : memref<1x32xf32, #tpu.memory_space<vmem>>, vector<1x32xf32>
    %c0_56 = arith.constant 0 : index
    %c0_57 = arith.constant 0 : index
    %99 = vector.load %arg12[%c0_56, %c0_57] : memref<1x32xf32, #tpu.memory_space<vmem>>, vector<1x32xf32>
    %c0_58 = arith.constant 0 : index
    %c0_59 = arith.constant 0 : index
    %c0_60 = arith.constant 0 : index
    %100 = vector.load %arg15[%c0_58, %c0_59, %c0_60] : memref<2x8x32xf32, #tpu.memory_space<vmem>>, vector<2x8x32xf32>
    %101 = arith.extf %0 : vector<2x8x32xbf16> to vector<2x8x32xf32>
    %102 = arith.addf %100, %101 : vector<2x8x32xf32>
    %cst_61 = arith.constant dense<0.000000e+00> : vector<2x8xf32>
    %103 = vector.multi_reduction <add>, %102, %cst_61 [2] : vector<2x8x32xf32> to vector<2x8xf32>
    %104 = vector.shape_cast %103 : vector<2x8xf32> to vector<2x8x1xf32>
    %cst_62 = arith.constant 3.200000e+01 : f32
    %105 = vector.broadcast %cst_62 : f32 to vector<2x8x1xf32>
    %106 = arith.divf %104, %105 : vector<2x8x1xf32>
    %107 = vector.broadcast %106 : vector<2x8x1xf32> to vector<2x8x32xf32>
    %108 = arith.subf %102, %107 : vector<2x8x32xf32>
    %109 = arith.mulf %108, %108 : vector<2x8x32xf32>
    %cst_63 = arith.constant dense<0.000000e+00> : vector<2x8xf32>
    %110 = vector.multi_reduction <add>, %109, %cst_63 [2] : vector<2x8x32xf32> to vector<2x8xf32>
    %111 = vector.shape_cast %110 : vector<2x8xf32> to vector<2x8x1xf32>
    %cst_64 = arith.constant 3.200000e+01 : f32
    %112 = vector.broadcast %cst_64 : f32 to vector<2x8x1xf32>
    %113 = arith.divf %111, %112 : vector<2x8x1xf32>
    %cst_65 = arith.constant 9.99999974E-6 : f32
    %114 = vector.broadcast %cst_65 : f32 to vector<2x8x1xf32>
    %115 = arith.addf %113, %114 : vector<2x8x1xf32>
    %116 = math.rsqrt %115 : vector<2x8x1xf32>
    %117 = vector.broadcast %106 : vector<2x8x1xf32> to vector<2x8x32xf32>
    %118 = arith.subf %102, %117 : vector<2x8x32xf32>
    %119 = vector.broadcast %116 : vector<2x8x1xf32> to vector<2x8x32xf32>
    %120 = arith.mulf %118, %119 : vector<2x8x32xf32>
    %121 = vector.shape_cast %98 : vector<1x32xf32> to vector<1x1x32xf32>
    %122 = vector.broadcast %121 : vector<1x1x32xf32> to vector<2x8x32xf32>
    %123 = arith.mulf %120, %122 : vector<2x8x32xf32>
    %124 = vector.shape_cast %99 : vector<1x32xf32> to vector<1x1x32xf32>
    %125 = vector.broadcast %124 : vector<1x1x32xf32> to vector<2x8x32xf32>
    %126 = arith.addf %123, %125 : vector<2x8x32xf32>
    %127 = vector.shape_cast %126 : vector<2x8x32xf32> to vector<16x32xf32>
    %128 = arith.truncf %127 : vector<16x32xf32> to vector<16x32xbf16>
    %c0_66 = arith.constant 0 : index
    %c0_67 = arith.constant 0 : index
    %129 = vector.load %arg7[%c0_66, %c0_67] : memref<32x32xbf16, #tpu.memory_space<vmem>>, vector<32x32xbf16>
    %cst_68 = arith.constant dense<0.000000e+00> : vector<16x32xf32>
    %130 = tpu.matmul %128, %129, %cst_68 {dimension_numbers = #tpu.dot_dimension_numbers<[1], [0], [0], [1], [0, 0, 1, 1], [], []>} : vector<16x32xbf16>, vector<32x32xbf16>, vector<16x32xf32> -> vector<16x32xf32>
    %c0_69 = arith.constant 0 : index
    %c0_70 = arith.constant 0 : index
    %131 = vector.load %arg8[%c0_69, %c0_70] : memref<1x32xf32, #tpu.memory_space<vmem>>, vector<1x32xf32>
    %132 = vector.broadcast %131 : vector<1x32xf32> to vector<16x32xf32>
    %133 = arith.addf %130, %132 : vector<16x32xf32>
    %cst_71 = arith.constant 0.000000e+00 : f32
    %134 = vector.broadcast %cst_71 : f32 to vector<16x32xf32>
    %135 = arith.maximumf %133, %134 : vector<16x32xf32>
    %136 = arith.truncf %135 : vector<16x32xf32> to vector<16x32xbf16>
    %c0_72 = arith.constant 0 : index
    %c0_73 = arith.constant 0 : index
    %137 = vector.load %arg9[%c0_72, %c0_73] : memref<32x32xbf16, #tpu.memory_space<vmem>>, vector<32x32xbf16>
    %cst_74 = arith.constant dense<0.000000e+00> : vector<16x32xf32>
    %138 = tpu.matmul %136, %137, %cst_74 {dimension_numbers = #tpu.dot_dimension_numbers<[1], [0], [0], [1], [0, 0, 1, 1], [], []>} : vector<16x32xbf16>, vector<32x32xbf16>, vector<16x32xf32> -> vector<16x32xf32>
    %c0_75 = arith.constant 0 : index
    %c0_76 = arith.constant 0 : index
    %139 = vector.load %arg10[%c0_75, %c0_76] : memref<1x32xf32, #tpu.memory_space<vmem>>, vector<1x32xf32>
    %140 = vector.broadcast %139 : vector<1x32xf32> to vector<16x32xf32>
    %141 = arith.addf %138, %140 : vector<16x32xf32>
    %142 = vector.shape_cast %141 : vector<16x32xf32> to vector<2x8x32xf32>
    %143 = arith.addf %142, %126 : vector<2x8x32xf32>
    %cst_77 = arith.constant dense<0.000000e+00> : vector<2x8xf32>
    %144 = vector.multi_reduction <add>, %143, %cst_77 [2] : vector<2x8x32xf32> to vector<2x8xf32>
    %145 = vector.shape_cast %144 : vector<2x8xf32> to vector<2x8x1xf32>
    %cst_78 = arith.constant 3.200000e+01 : f32
    %146 = vector.broadcast %cst_78 : f32 to vector<2x8x1xf32>
    %147 = arith.divf %145, %146 : vector<2x8x1xf32>
    %148 = vector.broadcast %147 : vector<2x8x1xf32> to vector<2x8x32xf32>
    %149 = arith.subf %143, %148 : vector<2x8x32xf32>
    %150 = arith.mulf %149, %149 : vector<2x8x32xf32>
    %cst_79 = arith.constant dense<0.000000e+00> : vector<2x8xf32>
    %151 = vector.multi_reduction <add>, %150, %cst_79 [2] : vector<2x8x32xf32> to vector<2x8xf32>
    %152 = vector.shape_cast %151 : vector<2x8xf32> to vector<2x8x1xf32>
    %cst_80 = arith.constant 3.200000e+01 : f32
    %153 = vector.broadcast %cst_80 : f32 to vector<2x8x1xf32>
    %154 = arith.divf %152, %153 : vector<2x8x1xf32>
    %cst_81 = arith.constant 9.99999974E-6 : f32
    %155 = vector.broadcast %cst_81 : f32 to vector<2x8x1xf32>
    %156 = arith.addf %154, %155 : vector<2x8x1xf32>
    %157 = math.rsqrt %156 : vector<2x8x1xf32>
    %158 = vector.broadcast %147 : vector<2x8x1xf32> to vector<2x8x32xf32>
    %159 = arith.subf %143, %158 : vector<2x8x32xf32>
    %160 = vector.broadcast %157 : vector<2x8x1xf32> to vector<2x8x32xf32>
    %161 = arith.mulf %159, %160 : vector<2x8x32xf32>
    %162 = vector.shape_cast %98 : vector<1x32xf32> to vector<1x1x32xf32>
    %163 = vector.broadcast %162 : vector<1x1x32xf32> to vector<2x8x32xf32>
    %164 = arith.mulf %161, %163 : vector<2x8x32xf32>
    %165 = vector.shape_cast %99 : vector<1x32xf32> to vector<1x1x32xf32>
    %166 = vector.broadcast %165 : vector<1x1x32xf32> to vector<2x8x32xf32>
    %167 = arith.addf %164, %166 : vector<2x8x32xf32>
    %c0_82 = arith.constant 0 : index
    %c0_83 = arith.constant 0 : index
    %c0_84 = arith.constant 0 : index
    %168 = vector.load %arg13[%c0_82, %c0_83, %c0_84] : memref<2x8x32xf32, #tpu.memory_space<vmem>>, vector<2x8x32xf32>
    tpu.vector_store %arg13[%c0_82, %c0_83, %c0_84], %167 {strides = array<i32>} : memref<2x8x32xf32, #tpu.memory_space<vmem>>, vector<2x8x32xf32>,
    return
  }
  func.func @transform_0(%arg0: i32) -> (i32, i32, i32) {
    %c0_i32 = arith.constant 0 : i32
    %c0_i32_0 = arith.constant 0 : i32
    %c0_i32_1 = arith.constant 0 : i32
    return %arg0, %c0_i32, %c0_i32_0 : i32, i32, i32
  }
  func.func @transform_1(%arg0: i32) -> (i32, i32, i32) {
    %c0_i32 = arith.constant 0 : i32
    %c0_i32_0 = arith.constant 0 : i32
    %c0_i32_1 = arith.constant 0 : i32
    return %arg0, %c0_i32, %c0_i32_0 : i32, i32, i32
  }
  func.func @transform_2(%arg0: i32) -> (i32, i32, i32) {
    %c0_i32 = arith.constant 0 : i32
    %c0_i32_0 = arith.constant 0 : i32
    %c0_i32_1 = arith.constant 0 : i32
    return %arg0, %c0_i32, %c0_i32_0 : i32, i32, i32
  }
  func.func @transform_3(%arg0: i32) -> (i32, i32) {
    %c0_i32 = arith.constant 0 : i32
    %c0_i32_0 = arith.constant 0 : i32
    %c0_i32_1 = arith.constant 0 : i32
    return %c0_i32, %c0_i32_0 : i32, i32
  }
  func.func @transform_4(%arg0: i32) -> (i32, i32) {
    %c0_i32 = arith.constant 0 : i32
    %c0_i32_0 = arith.constant 0 : i32
    %c0_i32_1 = arith.constant 0 : i32
    return %c0_i32, %c0_i32_0 : i32, i32
  }
  func.func @transform_5(%arg0: i32) -> (i32, i32) {
    %c0_i32 = arith.constant 0 : i32
    %c0_i32_0 = arith.constant 0 : i32
    %c0_i32_1 = arith.constant 0 : i32
    return %c0_i32, %c0_i32_0 : i32, i32
  }
  func.func @transform_6(%arg0: i32) -> (i32, i32) {
    %c0_i32 = arith.constant 0 : i32
    %c0_i32_0 = arith.constant 0 : i32
    %c0_i32_1 = arith.constant 0 : i32
    return %c0_i32, %c0_i32_0 : i32, i32
  }
  func.func @transform_7(%arg0: i32) -> (i32, i32) {
    %c0_i32 = arith.constant 0 : i32
    %c0_i32_0 = arith.constant 0 : i32
    %c0_i32_1 = arith.constant 0 : i32
    return %c0_i32, %c0_i32_0 : i32, i32
  }
  func.func @transform_8(%arg0: i32) -> (i32, i32) {
    %c0_i32 = arith.constant 0 : i32
    %c0_i32_0 = arith.constant 0 : i32
    %c0_i32_1 = arith.constant 0 : i32
    return %c0_i32, %c0_i32_0 : i32, i32
  }
  func.func @transform_9(%arg0: i32) -> (i32, i32) {
    %c0_i32 = arith.constant 0 : i32
    %c0_i32_0 = arith.constant 0 : i32
    %c0_i32_1 = arith.constant 0 : i32
    return %c0_i32, %c0_i32_0 : i32, i32
  }
  func.func @transform_10(%arg0: i32) -> (i32, i32) {
    %c0_i32 = arith.constant 0 : i32
    %c0_i32_0 = arith.constant 0 : i32
    %c0_i32_1 = arith.constant 0 : i32
    return %c0_i32, %c0_i32_0 : i32, i32
  }
  func.func @transform_11(%arg0: i32) -> (i32, i32) {
    %c0_i32 = arith.constant 0 : i32
    %c0_i32_0 = arith.constant 0 : i32
    %c0_i32_1 = arith.constant 0 : i32
    return %c0_i32, %c0_i32_0 : i32, i32
  }
  func.func @transform_12(%arg0: i32) -> (i32, i32, i32) {
    %c0_i32 = arith.constant 0 : i32
    %c0_i32_0 = arith.constant 0 : i32
    %c0_i32_1 = arith.constant 0 : i32
    return %arg0, %c0_i32, %c0_i32_0 : i32, i32, i32
  }
  func.func @transform_13(%arg0: i32) -> (i32, i32, i32, i32) {
    %c0_i32 = arith.constant 0 : i32
    %c0_i32_0 = arith.constant 0 : i32
    %c0_i32_1 = arith.constant 0 : i32
    %c0_i32_2 = arith.constant 0 : i32
    return %c0_i32, %arg0, %c0_i32_0, %c0_i32_1 : i32, i32, i32, i32
  }
}

</mosaic_0001>

<llo_original>
// kernel: tpu_custom_call.1
$region0: #{tpu_custom_call.1}
  #allocation0 [shape = 'u32[]', space=smem, size = 0x4, offset = 0x4, fixed_abs, tag = 'smem constant byte address 0x4 - core index']
  #allocation1 [shape = 'u32[144,128]{1,0:T(1,128)}', space=vmem, size = 0x12000, scoped, tag = 'internal scratch']
  #allocation2 [shape = 'f32[2,8,32]{2,1,0:T(8,128)}', space=vmem, size = 0x2000, scoped, tag = 'scratch operand']
  %s0 = inlined_call_operand.hbm [shape: bf16[2,8,32], index: 0, kind: input, shape index: {}]
  %s1 = inlined_call_operand.hbm [shape: bf16[2,8,32], index: 1, kind: input, shape index: {}]
  %s2 = inlined_call_operand.hbm [shape: bf16[2,8,32], index: 2, kind: input, shape index: {}]
  %s3 = inlined_call_operand.hbm [shape: bf16[32,32], index: 3, kind: input, shape index: {}]
  %s4 = inlined_call_operand.hbm [shape: bf16[32,32], index: 4, kind: input, shape index: {}]
  %s5 = inlined_call_operand.vmem [shape: bf16[32,32], index: 5, kind: input, shape index: {}]
  %s6 = inlined_call_operand.hbm [shape: bf16[32,32], index: 6, kind: input, shape index: {}]
  %s7 = inlined_call_operand.vmem [shape: f32[1,32], index: 7, kind: input, shape index: {}]
  %s8 = inlined_call_operand.hbm [shape: bf16[32,32], index: 8, kind: input, shape index: {}]
  %s9 = inlined_call_operand.vmem [shape: f32[1,32], index: 9, kind: input, shape index: {}]
  %s10 = inlined_call_operand.vmem [shape: f32[1,32], index: 10, kind: input, shape index: {}]
  %s11 = inlined_call_operand.vmem [shape: f32[1,32], index: 11, kind: input, shape index: {}]
  %s12 = inlined_call_operand.hbm [shape: f32[2,8,32], index: 12, kind: output, shape index: {0}]
  %s13 = inlined_call_operand.hbm [shape: f32[4,2,8,8], index: 13, kind: output, shape index: {1}]
  %14 = xla_tuple %s12, %s13
  %s15 = sld [smem:[#allocation0]]
  $region94: #{tpu_custom_call.1} parent=0
    _
  %s17 = ssub.s32 1, %s15
  %s18 = scalar_select 0, %s17, %s15
  $region1: #{tpu_custom_call.1} parent=0
    #allocation3 [shape = 'u8[4096]{0}', space=vmem, size = 0x1000, scoped, tag = 'input window, operand 0, single buffered']
    #allocation4 [shape = 's32[1]{0}', space=sflag, size = 0x4, scoped, tag = 'scoped memory for tpu_custom_call.1']
    #allocation5 [shape = 's32[1]{0}', space=sflag, size = 0x4, scoped, tag = 'scoped memory for tpu_custom_call.1']
    #allocation6 [shape = 'u8[4096]{0}', space=vmem, size = 0x1000, scoped, tag = 'input window, operand 1, single buffered']
    #allocation7 [shape = 's32[1]{0}', space=sflag, size = 0x4, scoped, tag = 'scoped memory for tpu_custom_call.1']
    #allocation8 [shape = 'u8[4096]{0}', space=vmem, size = 0x1000, scoped, tag = 'input window, operand 2, single buffered']
    #allocation9 [shape = 'u8[8192]{0}', space=vmem, size = 0x2000, scoped, tag = 'input window, operand 3, single buffered']
    #allocation10 [shape = 's32[1]{0}', space=sflag, size = 0x4, scoped, tag = 'scoped memory for tpu_custom_call.1']
    #allocation11 [shape = 'u8[8192]{0}', space=vmem, size = 0x2000, scoped, tag = 'input window, operand 4, single buffered']
    #allocation12 [shape = 'u8[8192]{0}', space=vmem, size = 0x2000, scoped, tag = 'input window, operand 6, single buffered']
    #allocation13 [shape = 's32[1]{0}', space=sflag, size = 0x4, scoped, tag = 'scoped memory for tpu_custom_call.1']
    #allocation14 [shape = 'u8[8192]{0}', space=vmem, size = 0x2000, scoped, tag = 'input window, operand 8, single buffered']
    #allocation15 [shape = 'u8[8192]{0}', space=vmem, size = 0x2000, scoped, tag = 'output window, operand 0, single buffered']
    #allocation16 [shape = 'u8[32768]{0}', space=vmem, size = 0x8000, scoped, tag = 'output window, operand 1, single buffered']
    #allocation17 [shape = 's32[1]{0}', space=sflag, size = 0x4, scoped, tag = 'scoped memory for tpu_custom_call.1']
    %19 = vsyncpa [#allocation4], 0
    %20 = vsyncpa [#allocation7], 0
    %21 = vsyncpa [#allocation10], 0
    %22 = vsyncpa [#allocation13], 0
    %23 = vsyncpa [#allocation5], 0
    %24 = vsyncpa [#allocation17], 0
    // Predicated region
    $region2: #{tpu_custom_call.1} parent=1 // pred_check
      _
    $region3: #{tpu_custom_call.1} parent=1 // pred_check_branch
      %26 = sbr.rel (0) target = $region5
    $region4: #{tpu_custom_call.1} parent=1 // pred_region
      %s28 = ssub.s32 128, 128
      %29 = vsyncadd [#allocation4], %s28
      %s30 = sshll.u32 [#allocation3], 4
      %s31 = int_to_ptr.vmem [resolvable:$true] %s30
      %36 = dma.hbm_to_vmem [thread:$0]  %s0, 128, %s31, [#allocation4], 64, 64, 4
    $region5: #{tpu_custom_call.1} parent=1 // pred_fallthru
      _
    // Predicated region
    $region6: #{tpu_custom_call.1} parent=1 // pred_check
      _
    $region7: #{tpu_custom_call.1} parent=1 // pred_check_branch
      %38 = sbr.rel (0) target = $region9
    $region8: #{tpu_custom_call.1} parent=1 // pred_region
      %s40 = ssub.s32 128, 128
      %41 = vsyncadd [#allocation7], %s40
      %s42 = sshll.u32 [#allocation6], 4
      %s43 = int_to_ptr.vmem [resolvable:$true] %s42
      %48 = dma.hbm_to_vmem [thread:$0]  %s1, 128, %s43, [#allocation7], 64, 64, 4
    $region9: #{tpu_custom_call.1} parent=1 // pred_fallthru
      _
    // Predicated region
    $region10: #{tpu_custom_call.1} parent=1 // pred_check
      _
    $region11: #{tpu_custom_call.1} parent=1 // pred_check_branch
      %50 = sbr.rel (0) target = $region13
    $region12: #{tpu_custom_call.1} parent=1 // pred_region
      %s52 = ssub.s32 128, 128
      %53 = vsyncadd [#allocation7], %s52
      %s54 = sshll.u32 [#allocation8], 4
      %s55 = int_to_ptr.vmem [resolvable:$true] %s54
      %60 = dma.hbm_to_vmem [thread:$0]  %s2, 128, %s55, [#allocation7], 64, 64, 4
    $region13: #{tpu_custom_call.1} parent=1 // pred_fallthru
      _
    // Predicated region
    $region14: #{tpu_custom_call.1} parent=1 // pred_check
      _
    $region15: #{tpu_custom_call.1} parent=1 // pred_check_branch
      %62 = sbr.rel (0) target = $region17
    $region16: #{tpu_custom_call.1} parent=1 // pred_region
      %s64 = ssub.s32 256, 256
      %65 = vsyncadd [#allocation10], %s64
      %s66 = sshll.u32 [#allocation9], 4
      %s67 = int_to_ptr.vmem [resolvable:$true] %s66
      %72 = dma.hbm_to_vmem [thread:$0]  %s3, 256, %s67, [#allocation10], 64, 64, 4
    $region17: #{tpu_custom_call.1} parent=1 // pred_fallthru
      _
    // Predicated region
    $region18: #{tpu_custom_call.1} parent=1 // pred_check
      _
    $region19: #{tpu_custom_call.1} parent=1 // pred_check_branch
      %74 = sbr.rel (0) target = $region21
    $region20: #{tpu_custom_call.1} parent=1 // pred_region
      %s76 = ssub.s32 256, 256
      %77 = vsyncadd [#allocation10], %s76
      %s78 = sshll.u32 [#allocation11], 4
      %s79 = int_to_ptr.vmem [resolvable:$true] %s78
      %84 = dma.hbm_to_vmem [thread:$0]  %s4, 256, %s79, [#allocation10], 64, 64, 4
    $region21: #{tpu_custom_call.1} parent=1 // pred_fallthru
      _
    // Predicated region
    $region22: #{tpu_custom_call.1} parent=1 // pred_check
      _
    $region23: #{tpu_custom_call.1} parent=1 // pred_check_branch
      %86 = sbr.rel (0) target = $region25
    $region24: #{tpu_custom_call.1} parent=1 // pred_region
      _
    $region25: #{tpu_custom_call.1} parent=1 // pred_fallthru
      _
    // Predicated region
    $region26: #{tpu_custom_call.1} parent=1 // pred_check
      _
    $region27: #{tpu_custom_call.1} parent=1 // pred_check_branch
      %88 = sbr.rel (0) target = $region29
    $region28: #{tpu_custom_call.1} parent=1 // pred_region
      %s90 = ssub.s32 256, 256
      %91 = vsyncadd [#allocation13], %s90
      %s92 = sshll.u32 [#allocation12], 4
      %s93 = int_to_ptr.vmem [resolvable:$true] %s92
      %98 = dma.hbm_to_vmem [thread:$0]  %s6, 256, %s93, [#allocation13], 64, 64, 4
    $region29: #{tpu_custom_call.1} parent=1 // pred_fallthru
      _
    // Predicated region
    $region30: #{tpu_custom_call.1} parent=1 // pred_check
      _
    $region31: #{tpu_custom_call.1} parent=1 // pred_check_branch
      %100 = sbr.rel (0) target = $region33
    $region32: #{tpu_custom_call.1} parent=1 // pred_region
      _
    $region33: #{tpu_custom_call.1} parent=1 // pred_fallthru
      _
    // Predicated region
    $region34: #{tpu_custom_call.1} parent=1 // pred_check
      _
    $region35: #{tpu_custom_call.1} parent=1 // pred_check_branch
      %102 = sbr.rel (0) target = $region37
    $region36: #{tpu_custom_call.1} parent=1 // pred_region
      %s104 = ssub.s32 256, 256
      %105 = vsyncadd [#allocation13], %s104
      %s106 = sshll.u32 [#allocation14], 4
      %s107 = int_to_ptr.vmem [resolvable:$true] %s106
      %112 = dma.hbm_to_vmem [thread:$0]  %s8, 256, %s107, [#allocation13], 64, 64, 4
    $region37: #{tpu_custom_call.1} parent=1 // pred_fallthru
      _
    // Predicated region
    $region38: #{tpu_custom_call.1} parent=1 // pred_check
      _
    $region39: #{tpu_custom_call.1} parent=1 // pred_check_branch
      %114 = sbr.rel (0) target = $region41
    $region40: #{tpu_custom_call.1} parent=1 // pred_region
      _
    $region41: #{tpu_custom_call.1} parent=1 // pred_fallthru
      _
    // Predicated region
    $region42: #{tpu_custom_call.1} parent=1 // pred_check
      _
    $region43: #{tpu_custom_call.1} parent=1 // pred_check_branch
      %116 = sbr.rel (0) target = $region45
    $region44: #{tpu_custom_call.1} parent=1 // pred_region
      _
    $region45: #{tpu_custom_call.1} parent=1 // pred_fallthru
      _
    // Predicated region
    $region46: #{tpu_custom_call.1} parent=1 // pred_check
      _
    $region47: #{tpu_custom_call.1} parent=1 // pred_check_branch
      %118 = sbr.rel (0) target = $region49
    $region48: #{tpu_custom_call.1} parent=1 // pred_region
      _
    $region49: #{tpu_custom_call.1} parent=1 // pred_fallthru
      _
    // Predicated region
    $region50: #{tpu_custom_call.1} parent=1 // pred_check
      _
    $region51: #{tpu_custom_call.1} parent=1 // pred_check_branch
      %120 = sbr.rel (0) target = $region53
    $region52: #{tpu_custom_call.1} parent=1 // pred_region
      %121 = dma.done [#allocation4], 128
    $region53: #{tpu_custom_call.1} parent=1 // pred_fallthru
      _
    // Predicated region
    $region54: #{tpu_custom_call.1} parent=1 // pred_check
      _
    $region55: #{tpu_custom_call.1} parent=1 // pred_check_branch
      %123 = sbr.rel (0) target = $region57
    $region56: #{tpu_custom_call.1} parent=1 // pred_region
      %124 = dma.done [#allocation7], 128
    $region57: #{tpu_custom_call.1} parent=1 // pred_fallthru
      _
    // Predicated region
    $region58: #{tpu_custom_call.1} parent=1 // pred_check
      _
    $region59: #{tpu_custom_call.1} parent=1 // pred_check_branch
      %126 = sbr.rel (0) target = $region61
    $region60: #{tpu_custom_call.1} parent=1 // pred_region
      %127 = dma.done [#allocation7], 128
    $region61: #{tpu_custom_call.1} parent=1 // pred_fallthru
      _
    // Predicated region
    $region62: #{tpu_custom_call.1} parent=1 // pred_check
      _
    $region63: #{tpu_custom_call.1} parent=1 // pred_check_branch
      %129 = sbr.rel (0) target = $region65
    $region64: #{tpu_custom_call.1} parent=1 // pred_region
      %130 = dma.done [#allocation10], 256
    $region65: #{tpu_custom_call.1} parent=1 // pred_fallthru
      _
    // Predicated region
    $region66: #{tpu_custom_call.1} parent=1 // pred_check
      _
    $region67: #{tpu_custom_call.1} parent=1 // pred_check_branch
      %132 = sbr.rel (0) target = $region69
    $region68: #{tpu_custom_call.1} parent=1 // pred_region
      %133 = dma.done [#allocation10], 256
    $region69: #{tpu_custom_call.1} parent=1 // pred_fallthru
      _
    // Predicated region
    $region70: #{tpu_custom_call.1} parent=1 // pred_check
      _
    $region71: #{tpu_custom_call.1} parent=1 // pred_check_branch
      %135 = sbr.rel (0) target = $region73
    $region72: #{tpu_custom_call.1} parent=1 // pred_region
      %136 = dma.done [#allocation13], 256
    $region73: #{tpu_custom_call.1} parent=1 // pred_fallthru
      _
    // Predicated region
    $region74: #{tpu_custom_call.1} parent=1 // pred_check
      _
    $region75: #{tpu_custom_call.1} parent=1 // pred_check_branch
      %138 = sbr.rel (0) target = $region77
    $region76: #{tpu_custom_call.1} parent=1 // pred_region
      %139 = dma.done [#allocation13], 256
    $region77: #{tpu_custom_call.1} parent=1 // pred_fallthru
      _
    %v141 = vld [vmem:[#allocation3] sm:$0xf]
    %v142 = vld [vmem:[#allocation3 + $0x4] sm:$0xf]
    %v143 = vld [vmem:[#allocation6] sm:$0xf]
    %v144 = vld [vmem:[#allocation6 + $0x4] sm:$0xf]
    %v145 = vld [vmem:[#allocation8] sm:$0xf]
    %v146 = vld [vmem:[#allocation8 + $0x4] sm:$0xf]
    %v147 = vld [vmem:[#allocation9] sm:$0xf]
    %v148 = vld [vmem:[#allocation9 + $0x4] sm:$0xf]
    %v149 = vld [vmem:[#allocation9 + $0x8] sm:$0xf]
    %v150 = vld [vmem:[#allocation9 + $0xc] sm:$0xf]
    %v153 = vunpack.c.l.b16 %v141
    %v154 = vunpack.c.l.b16 %v142
    %v155 = vpack.c.b16 %v154, %v153
    %v160 = vunpack.c.l.b16 %v147
    %v161 = vunpack.c.l.b16 %v148
    %v162 = vunpack.c.l.b16 %v149
    %v163 = vunpack.c.l.b16 %v150
    %v164 = vpack.c.b16 %v161, %v160
    %v165 = vpack.c.b16 %v163, %v162
    %vm168 = vcmask 261120
    %v170 = vsel %vm168, %v155, 0
    %172 = vmatprep.subr.bf16.mxu0 0
    %173 = vmatpush1.bf16.msra.mxu0 %v164
    %174 = vmatprep.subr.bf16.mxu0 0
    %175 = vmatpush1.bf16.msra.mxu0 %v165
    %176 = vmatprep.subr.bf16.mxu0 0
    %177 = vmatpush1.bf16.msra.mxu0 0
    %178 = vmatprep.subr.bf16.mxu0 0
    %179 = vmatpush1.bf16.msra.mxu0 0
    %180 = vmatprep.subr.bf16.mxu0 0
    %181 = vmatpush1.bf16.msra.mxu0 0
    %182 = vmatprep.subr.bf16.mxu0 0
    %183 = vmatpush1.bf16.msra.mxu0 0
    %184 = vmatprep.subr.bf16.mxu0 0
    %185 = vmatpush1.bf16.msra.mxu0 0
    %186 = vmatprep.subr.bf16.mxu0 0
    %187 = vmatpush1.bf16.msra.mxu0 0
    %188 = vmatprep.subr.bf16.mxu0 0
    %189 = vmatpush1.bf16.msra.mxu0 0
    %190 = vmatprep.subr.bf16.mxu0 0
    %191 = vmatpush1.bf16.msra.mxu0 0
    %192 = vmatprep.subr.bf16.mxu0 0
    %193 = vmatpush1.bf16.msra.mxu0 0
    %194 = vmatprep.subr.bf16.mxu0 0
    %195 = vmatpush1.bf16.msra.mxu0 0
    %196 = vmatprep.subr.bf16.mxu0 0
    %197 = vmatpush1.bf16.msra.mxu0 0
    %198 = vmatprep.subr.bf16.mxu0 0
    %199 = vmatpush1.bf16.msra.mxu0 0
    %200 = vmatprep.subr.bf16.mxu0 0
    %201 = vmatpush1.bf16.msra.mxu0 0
    %202 = vmatprep.subr.bf16.mxu0 0
    %203 = vmatpush1.bf16.msra.mxu0 0
    %204 = vmatprep.mubr.bf16.mxu0 0
    %205 = vmatmul.mubr.bf16.gmra.mrb[0].mxu0 %v170
    %v206 = vpop.f32.mrb[0].mxu0
    %v207 = vadd.f32 0.0, %v206
    %v208 = vpop.f32.mrb[0].mxu0
    %v209 = vpop.f32.mrb[0].mxu0
    %v210 = vadd.f32 0.0, %v209
    %v211 = vpop.f32.mrb[0].mxu0
    %212 = vdwg.mxu0
    %v213 = vld [vmem:[#allocation11] sm:$0xf]
    %v214 = vld [vmem:[#allocation11 + $0x4] sm:$0xf]
    %v215 = vld [vmem:[#allocation11 + $0x8] sm:$0xf]
    %v216 = vld [vmem:[#allocation11 + $0xc] sm:$0xf]
    %v219 = vunpack.c.l.b16 %v143
    %v220 = vunpack.c.l.b16 %v144
    %v221 = vpack.c.b16 %v220, %v219
    %v226 = vunpack.c.l.b16 %v213
    %v227 = vunpack.c.l.b16 %v214
    %v228 = vunpack.c.l.b16 %v215
    %v229 = vunpack.c.l.b16 %v216
    %v230 = vpack.c.b16 %v227, %v226
    %v231 = vpack.c.b16 %v229, %v228
    %v235 = vsel %vm168, %v221, 0
    %237 = vmatprep.subr.bf16.mxu0 0
    %238 = vmatpush1.bf16.msra.mxu0 %v230
    %239 = vmatprep.subr.bf16.mxu0 0
    %240 = vmatpush1.bf16.msra.mxu0 %v231
    %241 = vmatprep.subr.bf16.mxu0 0
    %242 = vmatpush1.bf16.msra.mxu0 0
    %243 = vmatprep.subr.bf16.mxu0 0
    %244 = vmatpush1.bf16.msra.mxu0 0
    %245 = vmatprep.subr.bf16.mxu0 0
    %246 = vmatpush1.bf16.msra.mxu0 0
    %247 = vmatprep.subr.bf16.mxu0 0
    %248 = vmatpush1.bf16.msra.mxu0 0
    %249 = vmatprep.subr.bf16.mxu0 0
    %250 = vmatpush1.bf16.msra.mxu0 0
    %251 = vmatprep.subr.bf16.mxu0 0
    %252 = vmatpush1.bf16.msra.mxu0 0
    %253 = vmatprep.subr.bf16.mxu0 0
    %254 = vmatpush1.bf16.msra.mxu0 0
    %255 = vmatprep.subr.bf16.mxu0 0
    %256 = vmatpush1.bf16.msra.mxu0 0
    %257 = vmatprep.subr.bf16.mxu0 0
    %258 = vmatpush1.bf16.msra.mxu0 0
    %259 = vmatprep.subr.bf16.mxu0 0
    %260 = vmatpush1.bf16.msra.mxu0 0
    %261 = vmatprep.subr.bf16.mxu0 0
    %262 = vmatpush1.bf16.msra.mxu0 0
    %263 = vmatprep.subr.bf16.mxu0 0
    %264 = vmatpush1.bf16.msra.mxu0 0
    %265 = vmatprep.subr.bf16.mxu0 0
    %266 = vmatpush1.bf16.msra.mxu0 0
    %267 = vmatprep.subr.bf16.mxu0 0
    %268 = vmatpush1.bf16.msra.mxu0 0
    %269 = vmatprep.mubr.bf16.mxu0 0
    %270 = vmatmul.mubr.bf16.gmra.mrb[0].mxu0 %v235
    %v271 = vpop.f32.mrb[0].mxu0
    %v272 = vadd.f32 0.0, %v271
    %v273 = vpop.f32.mrb[0].mxu0
    %v274 = vpop.f32.mrb[0].mxu0
    %v275 = vadd.f32 0.0, %v274
    %v276 = vpop.f32.mrb[0].mxu0
    %277 = vdwg.mxu0
    %v278 = vld [vmem:[%s5] sm:$0xf]
    %v279 = vld [vmem:[%s5 + $0x4] sm:$0xf]
    %v280 = vld [vmem:[%s5 + $0x8] sm:$0xf]
    %v281 = vld [vmem:[%s5 + $0xc] sm:$0xf]
    %v284 = vunpack.c.l.b16 %v145
    %v285 = vunpack.c.l.b16 %v146
    %v286 = vpack.c.b16 %v285, %v284
    %v291 = vunpack.c.l.b16 %v278
    %v292 = vunpack.c.l.b16 %v279
    %v293 = vunpack.c.l.b16 %v280
    %v294 = vunpack.c.l.b16 %v281
    %v295 = vpack.c.b16 %v292, %v291
    %v296 = vpack.c.b16 %v294, %v293
    %v300 = vsel %vm168, %v286, 0
    %302 = vmatprep.subr.bf16.mxu0 0
    %303 = vmatpush1.bf16.msra.mxu0 %v295
    %304 = vmatprep.subr.bf16.mxu0 0
    %305 = vmatpush1.bf16.msra.mxu0 %v296
    %306 = vmatprep.subr.bf16.mxu0 0
    %307 = vmatpush1.bf16.msra.mxu0 0
    %308 = vmatprep.subr.bf16.mxu0 0
    %309 = vmatpush1.bf16.msra.mxu0 0
    %310 = vmatprep.subr.bf16.mxu0 0
    %311 = vmatpush1.bf16.msra.mxu0 0
    %312 = vmatprep.subr.bf16.mxu0 0
    %313 = vmatpush1.bf16.msra.mxu0 0
    %314 = vmatprep.subr.bf16.mxu0 0
    %315 = vmatpush1.bf16.msra.mxu0 0
    %316 = vmatprep.subr.bf16.mxu0 0
    %317 = vmatpush1.bf16.msra.mxu0 0
    %318 = vmatprep.subr.bf16.mxu0 0
    %319 = vmatpush1.bf16.msra.mxu0 0
    %320 = vmatprep.subr.bf16.mxu0 0
    %321 = vmatpush1.bf16.msra.mxu0 0
    %322 = vmatprep.subr.bf16.mxu0 0
    %323 = vmatpush1.bf16.msra.mxu0 0
    %324 = vmatprep.subr.bf16.mxu0 0
    %325 = vmatpush1.bf16.msra.mxu0 0
    %326 = vmatprep.subr.bf16.mxu0 0
    %327 = vmatpush1.bf16.msra.mxu0 0
    %328 = vmatprep.subr.bf16.mxu0 0
    %329 = vmatpush1.bf16.msra.mxu0 0
    %330 = vmatprep.subr.bf16.mxu0 0
    %331 = vmatpush1.bf16.msra.mxu0 0
    %332 = vmatprep.subr.bf16.mxu0 0
    %333 = vmatpush1.bf16.msra.mxu0 0
    %334 = vmatprep.mubr.bf16.mxu0 0
    %335 = vmatmul.mubr.bf16.gmra.mrb[0].mxu0 %v300
    %v336 = vpop.f32.mrb[0].mxu0
    %v337 = vadd.f32 0.0, %v336
    %v338 = vpop.f32.mrb[0].mxu0
    %v339 = vpop.f32.mrb[0].mxu0
    %v340 = vadd.f32 0.0, %v339
    %v341 = vpop.f32.mrb[0].mxu0
    %342 = vdwg.mxu0
    %v343 = vpack.c.bf16 %v207, %v207
    %v344 = vpack.c.bf16 %v210, %v210
    %v345 = vpack.c.bf16 %v272, %v272
    %v346 = vpack.c.bf16 %v275, %v275
    %v347 = vpack.c.bf16 %v337, %v337
    %v348 = vpack.c.bf16 %v340, %v340
    %vm349 = vcmask 64512
    %v351 = vsel %vm349, %v343, 0
    %v354 = vsel %vm349, %v345, 0
    %356 = vmatprep.subr.bf16.mxu0 0
    %357 = vmatpush1.bf16.xpose.msra.mxu0 %v354
    %358 = vmatprep.subr.bf16.mxu0 0
    %359 = vmatpush1.bf16.xpose.msra.mxu0 0
    %360 = vmatprep.subr.bf16.mxu0 0
    %361 = vmatpush1.bf16.xpose.msra.mxu0 0
    %362 = vmatprep.subr.bf16.mxu0 0
    %363 = vmatpush1.bf16.xpose.msra.mxu0 0
    %364 = vmatprep.subr.bf16.mxu0 0
    %365 = vmatpush1.bf16.xpose.msra.mxu0 0
    %366 = vmatprep.subr.bf16.mxu0 0
    %367 = vmatpush1.bf16.xpose.msra.mxu0 0
    %368 = vmatprep.subr.bf16.mxu0 0
    %369 = vmatpush1.bf16.xpose.msra.mxu0 0
    %370 = vmatprep.subr.bf16.mxu0 0
    %371 = vmatpush1.bf16.xpose.msra.mxu0 0
    %372 = vmatprep.subr.bf16.mxu0 0
    %373 = vmatpush1.bf16.xpose.msra.mxu0 0
    %374 = vmatprep.subr.bf16.mxu0 0
    %375 = vmatpush1.bf16.xpose.msra.mxu0 0
    %376 = vmatprep.subr.bf16.mxu0 0
    %377 = vmatpush1.bf16.xpose.msra.mxu0 0
    %378 = vmatprep.subr.bf16.mxu0 0
    %379 = vmatpush1.bf16.xpose.msra.mxu0 0
    %380 = vmatprep.subr.bf16.mxu0 0
    %381 = vmatpush1.bf16.xpose.msra.mxu0 0
    %382 = vmatprep.subr.bf16.mxu0 0
    %383 = vmatpush1.bf16.xpose.msra.mxu0 0
    %384 = vmatprep.subr.bf16.mxu0 0
    %385 = vmatpush1.bf16.xpose.msra.mxu0 0
    %386 = vmatprep.subr.bf16.mxu0 0
    %387 = vmatpush1.bf16.xpose.msra.mxu0 0
    %388 = vmatprep.mubr.bf16.mxu0 0
    %389 = vmatmul.mubr.bf16.gmra.mrb[0].mxu0 %v351
    %v390 = vpop.f32.mrb[0].mxu0
    %v391 = vadd.f32 0.0, %v390
    %v392 = vpop.f32.mrb[0].mxu0
    %v393 = vpop.f32.mrb[0].mxu0
    %v394 = vpop.f32.mrb[0].mxu0
    %395 = vdwg.mxu0
    %v397 = vsel %vm349, %v344, 0
    %v400 = vsel %vm349, %v346, 0
    %402 = vmatprep.subr.bf16.mxu0 0
    %403 = vmatpush1.bf16.xpose.msra.mxu0 %v400
    %404 = vmatprep.subr.bf16.mxu0 0
    %405 = vmatpush1.bf16.xpose.msra.mxu0 0
    %406 = vmatprep.subr.bf16.mxu0 0
    %407 = vmatpush1.bf16.xpose.msra.mxu0 0
    %408 = vmatprep.subr.bf16.mxu0 0
    %409 = vmatpush1.bf16.xpose.msra.mxu0 0
    %410 = vmatprep.subr.bf16.mxu0 0
    %411 = vmatpush1.bf16.xpose.msra.mxu0 0
    %412 = vmatprep.subr.bf16.mxu0 0
    %413 = vmatpush1.bf16.xpose.msra.mxu0 0
    %414 = vmatprep.subr.bf16.mxu0 0
    %415 = vmatpush1.bf16.xpose.msra.mxu0 0
    %416 = vmatprep.subr.bf16.mxu0 0
    %417 = vmatpush1.bf16.xpose.msra.mxu0 0
    %418 = vmatprep.subr.bf16.mxu0 0
    %419 = vmatpush1.bf16.xpose.msra.mxu0 0
    %420 = vmatprep.subr.bf16.mxu0 0
    %421 = vmatpush1.bf16.xpose.msra.mxu0 0
    %422 = vmatprep.subr.bf16.mxu0 0
    %423 = vmatpush1.bf16.xpose.msra.mxu0 0
    %424 = vmatprep.subr.bf16.mxu0 0
    %425 = vmatpush1.bf16.xpose.msra.mxu0 0
    %426 = vmatprep.subr.bf16.mxu0 0
    %427 = vmatpush1.bf16.xpose.msra.mxu0 0
    %428 = vmatprep.subr.bf16.mxu0 0
    %429 = vmatpush1.bf16.xpose.msra.mxu0 0
    %430 = vmatprep.subr.bf16.mxu0 0
    %431 = vmatpush1.bf16.xpose.msra.mxu0 0
    %432 = vmatprep.subr.bf16.mxu0 0
    %433 = vmatpush1.bf16.xpose.msra.mxu0 0
    %434 = vmatprep.mubr.bf16.mxu0 0
    %435 = vmatmul.mubr.bf16.gmra.mrb[0].mxu0 %v397
    %v436 = vpop.f32.mrb[0].mxu0
    %v437 = vadd.f32 0.0, %v436
    %v438 = vpop.f32.mrb[0].mxu0
    %v439 = vpop.f32.mrb[0].mxu0
    %v440 = vpop.f32.mrb[0].mxu0
    %441 = vdwg.mxu0
    %v442 = vsel %vm349, %v391, -inf
    %443 = vmax.xlane.f32.xlu0 %v442
    %v444 = vpop.xlane.xlu0 %443
    %v445 = vsel %vm349, %v437, -inf
    %446 = vmax.xlane.f32.xlu0 %v445
    %v447 = vpop.xlane.xlu0 %446
    %v448 = vsub.f32 %v391, %v444
    %v449 = vsub.f32 %v437, %v447
    %v450 = vmul.f32 %v448, 1.442695
    %v451 = vpow.pop %v450
    %v452 = vmul.f32 %v449, 1.442695
    %v453 = vpow.pop %v452
    %v454 = vsel %vm349, %v451, 0.0
    %455 = vadd.xlane.f32.xlu0 %v454
    %v456 = vpop.xlane.xlu0 %455
    %v457 = vsel %vm349, %v453, 0.0
    %458 = vadd.xlane.f32.xlu0 %v457
    %v459 = vpop.xlane.xlu0 %458
    %v460 = vrcp.pop %v456
    %v461 = vrcp.pop %v459
    %v462 = vmul.f32 %v451, %v460
    %v463 = vmul.f32 %v453, %v461
    %464 = vst.msk [vmem:[#allocation16] sm:$0xff] %vm349, %v462
    %465 = vst.msk [vmem:[#allocation16 + $0x8] sm:$0xff] %vm349, %v463
    %v466 = vpack.c.bf16 %v462, %v462
    %v467 = vpack.c.bf16 %v463, %v463
    %v469 = vsel %vm349, %v466, 0
    %vm471 = vcmask 1043456
    %v473 = vsel %vm471, %v347, 0
    %475 = vmatprep.subr.bf16.mxu0 0
    %476 = vmatpush1.bf16.msra.mxu0 %v473
    %477 = vmatprep.subr.bf16.mxu0 0
    %478 = vmatpush1.bf16.msra.mxu0 0
    %479 = vmatprep.subr.bf16.mxu0 0
    %480 = vmatpush1.bf16.msra.mxu0 0
    %481 = vmatprep.subr.bf16.mxu0 0
    %482 = vmatpush1.bf16.msra.mxu0 0
    %483 = vmatprep.subr.bf16.mxu0 0
    %484 = vmatpush1.bf16.msra.mxu0 0
    %485 = vmatprep.subr.bf16.mxu0 0
    %486 = vmatpush1.bf16.msra.mxu0 0
    %487 = vmatprep.subr.bf16.mxu0 0
    %488 = vmatpush1.bf16.msra.mxu0 0
    %489 = vmatprep.subr.bf16.mxu0 0
    %490 = vmatpush1.bf16.msra.mxu0 0
    %491 = vmatprep.subr.bf16.mxu0 0
    %492 = vmatpush1.bf16.msra.mxu0 0
    %493 = vmatprep.subr.bf16.mxu0 0
    %494 = vmatpush1.bf16.msra.mxu0 0
    %495 = vmatprep.subr.bf16.mxu0 0
    %496 = vmatpush1.bf16.msra.mxu0 0
    %497 = vmatprep.subr.bf16.mxu0 0
    %498 = vmatpush1.bf16.msra.mxu0 0
    %499 = vmatprep.subr.bf16.mxu0 0
    %500 = vmatpush1.bf16.msra.mxu0 0
    %501 = vmatprep.subr.bf16.mxu0 0
    %502 = vmatpush1.bf16.msra.mxu0 0
    %503 = vmatprep.subr.bf16.mxu0 0
    %504 = vmatpush1.bf16.msra.mxu0 0
    %505 = vmatprep.subr.bf16.mxu0 0
    %506 = vmatpush1.bf16.msra.mxu0 0
    %507 = vmatprep.mubr.bf16.mxu0 0
    %508 = vmatmul.mubr.bf16.gmra.mrb[0].mxu0 %v469
    %v509 = vpop.f32.mrb[0].mxu0
    %v510 = vadd.f32 0.0, %v509
    %v511 = vpop.f32.mrb[0].mxu0
    %v512 = vpop.f32.mrb[0].mxu0
    %v513 = vpop.f32.mrb[0].mxu0
    %514 = vdwg.mxu0
    %v516 = vsel %vm349, %v467, 0
    %v519 = vsel %vm471, %v348, 0
    %521 = vmatprep.subr.bf16.mxu0 0
    %522 = vmatpush1.bf16.msra.mxu0 %v519
    %523 = vmatprep.subr.bf16.mxu0 0
    %524 = vmatpush1.bf16.msra.mxu0 0
    %525 = vmatprep.subr.bf16.mxu0 0
    %526 = vmatpush1.bf16.msra.mxu0 0
    %527 = vmatprep.subr.bf16.mxu0 0
    %528 = vmatpush1.bf16.msra.mxu0 0
    %529 = vmatprep.subr.bf16.mxu0 0
    %530 = vmatpush1.bf16.msra.mxu0 0
    %531 = vmatprep.subr.bf16.mxu0 0
    %532 = vmatpush1.bf16.msra.mxu0 0
    %533 = vmatprep.subr.bf16.mxu0 0
    %534 = vmatpush1.bf16.msra.mxu0 0
    %535 = vmatprep.subr.bf16.mxu0 0
    %536 = vmatpush1.bf16.msra.mxu0 0
    %537 = vmatprep.subr.bf16.mxu0 0
    %538 = vmatpush1.bf16.msra.mxu0 0
    %539 = vmatprep.subr.bf16.mxu0 0
    %540 = vmatpush1.bf16.msra.mxu0 0
    %541 = vmatprep.subr.bf16.mxu0 0
    %542 = vmatpush1.bf16.msra.mxu0 0
    %543 = vmatprep.subr.bf16.mxu0 0
    %544 = vmatpush1.bf16.msra.mxu0 0
    %545 = vmatprep.subr.bf16.mxu0 0
    %546 = vmatpush1.bf16.msra.mxu0 0
    %547 = vmatprep.subr.bf16.mxu0 0
    %548 = vmatpush1.bf16.msra.mxu0 0
    %549 = vmatprep.subr.bf16.mxu0 0
    %550 = vmatpush1.bf16.msra.mxu0 0
    %551 = vmatprep.subr.bf16.mxu0 0
    %552 = vmatpush1.bf16.msra.mxu0 0
    %553 = vmatprep.mubr.bf16.mxu0 0
    %554 = vmatmul.mubr.bf16.gmra.mrb[0].mxu0 %v516
    %v555 = vpop.f32.mrb[0].mxu0
    %v556 = vadd.f32 0.0, %v555
    %v557 = vpop.f32.mrb[0].mxu0
    %v558 = vpop.f32.mrb[0].mxu0
    %v559 = vpop.f32.mrb[0].mxu0
    %560 = vdwg.mxu0
    %561 = vst.msk [vmem:[#allocation2] sm:$0xff] %vm349, %v510
    %562 = vst.msk [vmem:[#allocation2 + $0x8] sm:$0xff] %vm349, %v556
    %564 = vrot.lane.b32.xlu0 %v343, 120
    %v565 = vpop.permute.xlu0 %564
    %567 = vrot.lane.b32.xlu0 %v345, 120
    %v568 = vpop.permute.xlu0 %567
    %v570 = vsel %vm349, %v565, 0
    %v573 = vsel %vm349, %v568, 0
    %575 = vmatprep.subr.bf16.mxu0 0
    %576 = vmatpush1.bf16.xpose.msra.mxu0 %v573
    %577 = vmatprep.subr.bf16.mxu0 0
    %578 = vmatpush1.bf16.xpose.msra.mxu0 0
    %579 = vmatprep.subr.bf16.mxu0 0
    %580 = vmatpush1.bf16.xpose.msra.mxu0 0
    %581 = vmatprep.subr.bf16.mxu0 0
    %582 = vmatpush1.bf16.xpose.msra.mxu0 0
    %583 = vmatprep.subr.bf16.mxu0 0
    %584 = vmatpush1.bf16.xpose.msra.mxu0 0
    %585 = vmatprep.subr.bf16.mxu0 0
    %586 = vmatpush1.bf16.xpose.msra.mxu0 0
    %587 = vmatprep.subr.bf16.mxu0 0
    %588 = vmatpush1.bf16.xpose.msra.mxu0 0
    %589 = vmatprep.subr.bf16.mxu0 0
    %590 = vmatpush1.bf16.xpose.msra.mxu0 0
    %591 = vmatprep.subr.bf16.mxu0 0
    %592 = vmatpush1.bf16.xpose.msra.mxu0 0
    %593 = vmatprep.subr.bf16.mxu0 0
    %594 = vmatpush1.bf16.xpose.msra.mxu0 0
    %595 = vmatprep.subr.bf16.mxu0 0
    %596 = vmatpush1.bf16.xpose.msra.mxu0 0
    %597 = vmatprep.subr.bf16.mxu0 0
    %598 = vmatpush1.bf16.xpose.msra.mxu0 0
    %599 = vmatprep.subr.bf16.mxu0 0
    %600 = vmatpush1.bf16.xpose.msra.mxu0 0
    %601 = vmatprep.subr.bf16.mxu0 0
    %602 = vmatpush1.bf16.xpose.msra.mxu0 0
    %603 = vmatprep.subr.bf16.mxu0 0
    %604 = vmatpush1.bf16.xpose.msra.mxu0 0
    %605 = vmatprep.subr.bf16.mxu0 0
    %606 = vmatpush1.bf16.xpose.msra.mxu0 0
    %607 = vmatprep.mubr.bf16.mxu0 0
    %608 = vmatmul.mubr.bf16.gmra.mrb[0].mxu0 %v570
    %v609 = vpop.f32.mrb[0].mxu0
    %v610 = vadd.f32 0.0, %v609
    %v611 = vpop.f32.mrb[0].mxu0
    %v612 = vpop.f32.mrb[0].mxu0
    %v613 = vpop.f32.mrb[0].mxu0
    %614 = vdwg.mxu0
    %616 = vrot.lane.b32.xlu0 %v344, 120
    %v617 = vpop.permute.xlu0 %616
    %619 = vrot.lane.b32.xlu0 %v346, 120
    %v620 = vpop.permute.xlu0 %619
    %v622 = vsel %vm349, %v617, 0
    %v625 = vsel %vm349, %v620, 0
    %627 = vmatprep.subr.bf16.mxu0 0
    %628 = vmatpush1.bf16.xpose.msra.mxu0 %v625
    %629 = vmatprep.subr.bf16.mxu0 0
    %630 = vmatpush1.bf16.xpose.msra.mxu0 0
    %631 = vmatprep.subr.bf16.mxu0 0
    %632 = vmatpush1.bf16.xpose.msra.mxu0 0
    %633 = vmatprep.subr.bf16.mxu0 0
    %634 = vmatpush1.bf16.xpose.msra.mxu0 0
    %635 = vmatprep.subr.bf16.mxu0 0
    %636 = vmatpush1.bf16.xpose.msra.mxu0 0
    %637 = vmatprep.subr.bf16.mxu0 0
    %638 = vmatpush1.bf16.xpose.msra.mxu0 0
    %639 = vmatprep.subr.bf16.mxu0 0
    %640 = vmatpush1.bf16.xpose.msra.mxu0 0
    %641 = vmatprep.subr.bf16.mxu0 0
    %642 = vmatpush1.bf16.xpose.msra.mxu0 0
    %643 = vmatprep.subr.bf16.mxu0 0
    %644 = vmatpush1.bf16.xpose.msra.mxu0 0
    %645 = vmatprep.subr.bf16.mxu0 0
    %646 = vmatpush1.bf16.xpose.msra.mxu0 0
    %647 = vmatprep.subr.bf16.mxu0 0
    %648 = vmatpush1.bf16.xpose.msra.mxu0 0
    %649 = vmatprep.subr.bf16.mxu0 0
    %650 = vmatpush1.bf16.xpose.msra.mxu0 0
    %651 = vmatprep.subr.bf16.mxu0 0
    %652 = vmatpush1.bf16.xpose.msra.mxu0 0
    %653 = vmatprep.subr.bf16.mxu0 0
    %654 = vmatpush1.bf16.xpose.msra.mxu0 0
    %655 = vmatprep.subr.bf16.mxu0 0
    %656 = vmatpush1.bf16.xpose.msra.mxu0 0
    %657 = vmatprep.subr.bf16.mxu0 0
    %658 = vmatpush1.bf16.xpose.msra.mxu0 0
    %659 = vmatprep.mubr.bf16.mxu0 0
    %660 = vmatmul.mubr.bf16.gmra.mrb[0].mxu0 %v622
    %v661 = vpop.f32.mrb[0].mxu0
    %v662 = vadd.f32 0.0, %v661
    %v663 = vpop.f32.mrb[0].mxu0
    %v664 = vpop.f32.mrb[0].mxu0
    %v665 = vpop.f32.mrb[0].mxu0
    %666 = vdwg.mxu0
    %v667 = vsel %vm349, %v610, -inf
    %668 = vmax.xlane.f32.xlu0 %v667
    %v669 = vpop.xlane.xlu0 %668
    %v670 = vsel %vm349, %v662, -inf
    %671 = vmax.xlane.f32.xlu0 %v670
    %v672 = vpop.xlane.xlu0 %671
    %v673 = vsub.f32 %v610, %v669
    %v674 = vsub.f32 %v662, %v672
    %v675 = vmul.f32 %v673, 1.442695
    %v676 = vpow.pop %v675
    %v677 = vmul.f32 %v674, 1.442695
    %v678 = vpow.pop %v677
    %v679 = vsel %vm349, %v676, 0.0
    %680 = vadd.xlane.f32.xlu0 %v679
    %v681 = vpop.xlane.xlu0 %680
    %v682 = vsel %vm349, %v678, 0.0
    %683 = vadd.xlane.f32.xlu0 %v682
    %v684 = vpop.xlane.xlu0 %683
    %v685 = vrcp.pop %v681
    %v686 = vrcp.pop %v684
    %v687 = vmul.f32 %v676, %v685
    %v688 = vmul.f32 %v678, %v686
    %s689 = scalar_lea.vmem [#allocation16], 16
    %690 = vst.msk [vmem:[%s689] sm:$0xff] %vm349, %v687
    %691 = vst.msk [vmem:[%s689 + $0x8] sm:$0xff] %vm349, %v688
    %v692 = vpack.c.bf16 %v687, %v687
    %v693 = vpack.c.bf16 %v688, %v688
    %695 = vrot.lane.b32.xlu0 %v347, 120
    %v696 = vpop.permute.xlu0 %695
    %v698 = vsel %vm349, %v692, 0
    %v701 = vsel %vm471, %v696, 0
    %703 = vmatprep.subr.bf16.mxu0 0
    %704 = vmatpush1.bf16.msra.mxu0 %v701
    %705 = vmatprep.subr.bf16.mxu0 0
    %706 = vmatpush1.bf16.msra.mxu0 0
    %707 = vmatprep.subr.bf16.mxu0 0
    %708 = vmatpush1.bf16.msra.mxu0 0
    %709 = vmatprep.subr.bf16.mxu0 0
    %710 = vmatpush1.bf16.msra.mxu0 0
    %711 = vmatprep.subr.bf16.mxu0 0
    %712 = vmatpush1.bf16.msra.mxu0 0
    %713 = vmatprep.subr.bf16.mxu0 0
    %714 = vmatpush1.bf16.msra.mxu0 0
    %715 = vmatprep.subr.bf16.mxu0 0
    %716 = vmatpush1.bf16.msra.mxu0 0
    %717 = vmatprep.subr.bf16.mxu0 0
    %718 = vmatpush1.bf16.msra.mxu0 0
    %719 = vmatprep.subr.bf16.mxu0 0
    %720 = vmatpush1.bf16.msra.mxu0 0
    %721 = vmatprep.subr.bf16.mxu0 0
    %722 = vmatpush1.bf16.msra.mxu0 0
    %723 = vmatprep.subr.bf16.mxu0 0
    %724 = vmatpush1.bf16.msra.mxu0 0
    %725 = vmatprep.subr.bf16.mxu0 0
    %726 = vmatpush1.bf16.msra.mxu0 0
    %727 = vmatprep.subr.bf16.mxu0 0
    %728 = vmatpush1.bf16.msra.mxu0 0
    %729 = vmatprep.subr.bf16.mxu0 0
    %730 = vmatpush1.bf16.msra.mxu0 0
    %731 = vmatprep.subr.bf16.mxu0 0
    %732 = vmatpush1.bf16.msra.mxu0 0
    %733 = vmatprep.subr.bf16.mxu0 0
    %734 = vmatpush1.bf16.msra.mxu0 0
    %735 = vmatprep.mubr.bf16.mxu0 0
    %736 = vmatmul.mubr.bf16.gmra.mrb[0].mxu0 %v698
    %v737 = vpop.f32.mrb[0].mxu0
    %v738 = vadd.f32 0.0, %v737
    %v739 = vpop.f32.mrb[0].mxu0
    %v740 = vpop.f32.mrb[0].mxu0
    %v741 = vpop.f32.mrb[0].mxu0
    %742 = vdwg.mxu0
    %744 = vrot.lane.b32.xlu0 %v348, 120
    %v745 = vpop.permute.xlu0 %744
    %v747 = vsel %vm349, %v693, 0
    %v750 = vsel %vm471, %v745, 0
    %752 = vmatprep.subr.bf16.mxu0 0
    %753 = vmatpush1.bf16.msra.mxu0 %v750
    %754 = vmatprep.subr.bf16.mxu0 0
    %755 = vmatpush1.bf16.msra.mxu0 0
    %756 = vmatprep.subr.bf16.mxu0 0
    %757 = vmatpush1.bf16.msra.mxu0 0
    %758 = vmatprep.subr.bf16.mxu0 0
    %759 = vmatpush1.bf16.msra.mxu0 0
    %760 = vmatprep.subr.bf16.mxu0 0
    %761 = vmatpush1.bf16.msra.mxu0 0
    %762 = vmatprep.subr.bf16.mxu0 0
    %763 = vmatpush1.bf16.msra.mxu0 0
    %764 = vmatprep.subr.bf16.mxu0 0
    %765 = vmatpush1.bf16.msra.mxu0 0
    %766 = vmatprep.subr.bf16.mxu0 0
    %767 = vmatpush1.bf16.msra.mxu0 0
    %768 = vmatprep.subr.bf16.mxu0 0
    %769 = vmatpush1.bf16.msra.mxu0 0
    %770 = vmatprep.subr.bf16.mxu0 0
    %771 = vmatpush1.bf16.msra.mxu0 0
    %772 = vmatprep.subr.bf16.mxu0 0
    %773 = vmatpush1.bf16.msra.mxu0 0
    %774 = vmatprep.subr.bf16.mxu0 0
    %775 = vmatpush1.bf16.msra.mxu0 0
    %776 = vmatprep.subr.bf16.mxu0 0
    %777 = vmatpush1.bf16.msra.mxu0 0
    %778 = vmatprep.subr.bf16.mxu0 0
    %779 = vmatpush1.bf16.msra.mxu0 0
    %780 = vmatprep.subr.bf16.mxu0 0
    %781 = vmatpush1.bf16.msra.mxu0 0
    %782 = vmatprep.subr.bf16.mxu0 0
    %783 = vmatpush1.bf16.msra.mxu0 0
    %784 = vmatprep.mubr.bf16.mxu0 0
    %785 = vmatmul.mubr.bf16.gmra.mrb[0].mxu0 %v747
    %v786 = vpop.f32.mrb[0].mxu0
    %v787 = vadd.f32 0.0, %v786
    %v788 = vpop.f32.mrb[0].mxu0
    %v789 = vpop.f32.mrb[0].mxu0
    %v790 = vpop.f32.mrb[0].mxu0
    %791 = vdwg.mxu0
    %794 = vrot.lane.b32.xlu0 %v738, 8
    %v795 = vpop.permute.xlu0 %794
    %796 = vrot.lane.b32.xlu0 %v787, 8
    %v797 = vpop.permute.xlu0 %796
    %vm800 = vcmask 130112
    %801 = vst.msk [vmem:[#allocation2] sm:$0xff] %vm800, %v795
    %802 = vst.msk [vmem:[#allocation2 + $0x8] sm:$0xff] %vm800, %v797
    %803 = vrot.lane.b32.xlu0 %v343, 112
    %v804 = vpop.permute.xlu0 %803
    %805 = vrot.lane.b32.xlu0 %v345, 112
    %v806 = vpop.permute.xlu0 %805
    %v808 = vsel %vm349, %v804, 0
    %v811 = vsel %vm349, %v806, 0
    %813 = vmatprep.subr.bf16.mxu0 0
    %814 = vmatpush1.bf16.xpose.msra.mxu0 %v811
    %815 = vmatprep.subr.bf16.mxu0 0
    %816 = vmatpush1.bf16.xpose.msra.mxu0 0
    %817 = vmatprep.subr.bf16.mxu0 0
    %818 = vmatpush1.bf16.xpose.msra.mxu0 0
    %819 = vmatprep.subr.bf16.mxu0 0
    %820 = vmatpush1.bf16.xpose.msra.mxu0 0
    %821 = vmatprep.subr.bf16.mxu0 0
    %822 = vmatpush1.bf16.xpose.msra.mxu0 0
    %823 = vmatprep.subr.bf16.mxu0 0
    %824 = vmatpush1.bf16.xpose.msra.mxu0 0
    %825 = vmatprep.subr.bf16.mxu0 0
    %826 = vmatpush1.bf16.xpose.msra.mxu0 0
    %827 = vmatprep.subr.bf16.mxu0 0
    %828 = vmatpush1.bf16.xpose.msra.mxu0 0
    %829 = vmatprep.subr.bf16.mxu0 0
    %830 = vmatpush1.bf16.xpose.msra.mxu0 0
    %831 = vmatprep.subr.bf16.mxu0 0
    %832 = vmatpush1.bf16.xpose.msra.mxu0 0
    %833 = vmatprep.subr.bf16.mxu0 0
    %834 = vmatpush1.bf16.xpose.msra.mxu0 0
    %835 = vmatprep.subr.bf16.mxu0 0
    %836 = vmatpush1.bf16.xpose.msra.mxu0 0
    %837 = vmatprep.subr.bf16.mxu0 0
    %838 = vmatpush1.bf16.xpose.msra.mxu0 0
    %839 = vmatprep.subr.bf16.mxu0 0
    %840 = vmatpush1.bf16.xpose.msra.mxu0 0
    %841 = vmatprep.subr.bf16.mxu0 0
    %842 = vmatpush1.bf16.xpose.msra.mxu0 0
    %843 = vmatprep.subr.bf16.mxu0 0
    %844 = vmatpush1.bf16.xpose.msra.mxu0 0
    %845 = vmatprep.mubr.bf16.mxu0 0
    %846 = vmatmul.mubr.bf16.gmra.mrb[0].mxu0 %v808
    %v847 = vpop.f32.mrb[0].mxu0
    %v848 = vadd.f32 0.0, %v847
    %v849 = vpop.f32.mrb[0].mxu0
    %v850 = vpop.f32.mrb[0].mxu0
    %v851 = vpop.f32.mrb[0].mxu0
    %852 = vdwg.mxu0
    %853 = vrot.lane.b32.xlu0 %v344, 112
    %v854 = vpop.permute.xlu0 %853
    %855 = vrot.lane.b32.xlu0 %v346, 112
    %v856 = vpop.permute.xlu0 %855
    %v858 = vsel %vm349, %v854, 0
    %v861 = vsel %vm349, %v856, 0
    %863 = vmatprep.subr.bf16.mxu0 0
    %864 = vmatpush1.bf16.xpose.msra.mxu0 %v861
    %865 = vmatprep.subr.bf16.mxu0 0
    %866 = vmatpush1.bf16.xpose.msra.mxu0 0
    %867 = vmatprep.subr.bf16.mxu0 0
    %868 = vmatpush1.bf16.xpose.msra.mxu0 0
    %869 = vmatprep.subr.bf16.mxu0 0
    %870 = vmatpush1.bf16.xpose.msra.mxu0 0
    %871 = vmatprep.subr.bf16.mxu0 0
    %872 = vmatpush1.bf16.xpose.msra.mxu0 0
    %873 = vmatprep.subr.bf16.mxu0 0
    %874 = vmatpush1.bf16.xpose.msra.mxu0 0
    %875 = vmatprep.subr.bf16.mxu0 0
    %876 = vmatpush1.bf16.xpose.msra.mxu0 0
    %877 = vmatprep.subr.bf16.mxu0 0
    %878 = vmatpush1.bf16.xpose.msra.mxu0 0
    %879 = vmatprep.subr.bf16.mxu0 0
    %880 = vmatpush1.bf16.xpose.msra.mxu0 0
    %881 = vmatprep.subr.bf16.mxu0 0
    %882 = vmatpush1.bf16.xpose.msra.mxu0 0
    %883 = vmatprep.subr.bf16.mxu0 0
    %884 = vmatpush1.bf16.xpose.msra.mxu0 0
    %885 = vmatprep.subr.bf16.mxu0 0
    %886 = vmatpush1.bf16.xpose.msra.mxu0 0
    %887 = vmatprep.subr.bf16.mxu0 0
    %888 = vmatpush1.bf16.xpose.msra.mxu0 0
    %889 = vmatprep.subr.bf16.mxu0 0
    %890 = vmatpush1.bf16.xpose.msra.mxu0 0
    %891 = vmatprep.subr.bf16.mxu0 0
    %892 = vmatpush1.bf16.xpose.msra.mxu0 0
    %893 = vmatprep.subr.bf16.mxu0 0
    %894 = vmatpush1.bf16.xpose.msra.mxu0 0
    %895 = vmatprep.mubr.bf16.mxu0 0
    %896 = vmatmul.mubr.bf16.gmra.mrb[0].mxu0 %v858
    %v897 = vpop.f32.mrb[0].mxu0
    %v898 = vadd.f32 0.0, %v897
    %v899 = vpop.f32.mrb[0].mxu0
    %v900 = vpop.f32.mrb[0].mxu0
    %v901 = vpop.f32.mrb[0].mxu0
    %902 = vdwg.mxu0
    %v903 = vsel %vm349, %v848, -inf
    %904 = vmax.xlane.f32.xlu0 %v903
    %v905 = vpop.xlane.xlu0 %904
    %v906 = vsel %vm349, %v898, -inf
    %907 = vmax.xlane.f32.xlu0 %v906
    %v908 = vpop.xlane.xlu0 %907
    %v909 = vsub.f32 %v848, %v905
    %v910 = vsub.f32 %v898, %v908
    %v911 = vmul.f32 %v909, 1.442695
    %v912 = vpow.pop %v911
    %v913 = vmul.f32 %v910, 1.442695
    %v914 = vpow.pop %v913
    %v915 = vsel %vm349, %v912, 0.0
    %916 = vadd.xlane.f32.xlu0 %v915
    %v917 = vpop.xlane.xlu0 %916
    %v918 = vsel %vm349, %v914, 0.0
    %919 = vadd.xlane.f32.xlu0 %v918
    %v920 = vpop.xlane.xlu0 %919
    %v921 = vrcp.pop %v917
    %v922 = vrcp.pop %v920
    %v923 = vmul.f32 %v912, %v921
    %v924 = vmul.f32 %v914, %v922
    %s925 = scalar_lea.vmem [#allocation16], 32
    %926 = vst.msk [vmem:[%s925] sm:$0xff] %vm349, %v923
    %927 = vst.msk [vmem:[%s925 + $0x8] sm:$0xff] %vm349, %v924
    %v928 = vpack.c.bf16 %v923, %v923
    %v929 = vpack.c.bf16 %v924, %v924
    %930 = vrot.lane.b32.xlu0 %v347, 112
    %v931 = vpop.permute.xlu0 %930
    %v933 = vsel %vm349, %v928, 0
    %v936 = vsel %vm471, %v931, 0
    %938 = vmatprep.subr.bf16.mxu0 0
    %939 = vmatpush1.bf16.msra.mxu0 %v936
    %940 = vmatprep.subr.bf16.mxu0 0
    %941 = vmatpush1.bf16.msra.mxu0 0
    %942 = vmatprep.subr.bf16.mxu0 0
    %943 = vmatpush1.bf16.msra.mxu0 0
    %944 = vmatprep.subr.bf16.mxu0 0
    %945 = vmatpush1.bf16.msra.mxu0 0
    %946 = vmatprep.subr.bf16.mxu0 0
    %947 = vmatpush1.bf16.msra.mxu0 0
    %948 = vmatprep.subr.bf16.mxu0 0
    %949 = vmatpush1.bf16.msra.mxu0 0
    %950 = vmatprep.subr.bf16.mxu0 0
    %951 = vmatpush1.bf16.msra.mxu0 0
    %952 = vmatprep.subr.bf16.mxu0 0
    %953 = vmatpush1.bf16.msra.mxu0 0
    %954 = vmatprep.subr.bf16.mxu0 0
    %955 = vmatpush1.bf16.msra.mxu0 0
    %956 = vmatprep.subr.bf16.mxu0 0
    %957 = vmatpush1.bf16.msra.mxu0 0
    %958 = vmatprep.subr.bf16.mxu0 0
    %959 = vmatpush1.bf16.msra.mxu0 0
    %960 = vmatprep.subr.bf16.mxu0 0
    %961 = vmatpush1.bf16.msra.mxu0 0
    %962 = vmatprep.subr.bf16.mxu0 0
    %963 = vmatpush1.bf16.msra.mxu0 0
    %964 = vmatprep.subr.bf16.mxu0 0
    %965 = vmatpush1.bf16.msra.mxu0 0
    %966 = vmatprep.subr.bf16.mxu0 0
    %967 = vmatpush1.bf16.msra.mxu0 0
    %968 = vmatprep.subr.bf16.mxu0 0
    %969 = vmatpush1.bf16.msra.mxu0 0
    %970 = vmatprep.mubr.bf16.mxu0 0
    %971 = vmatmul.mubr.bf16.gmra.mrb[0].mxu0 %v933
    %v972 = vpop.f32.mrb[0].mxu0
    %v973 = vadd.f32 0.0, %v972
    %v974 = vpop.f32.mrb[0].mxu0
    %v975 = vpop.f32.mrb[0].mxu0
    %v976 = vpop.f32.mrb[0].mxu0
    %977 = vdwg.mxu0
    %978 = vrot.lane.b32.xlu0 %v348, 112
    %v979 = vpop.permute.xlu0 %978
    %v981 = vsel %vm349, %v929, 0
    %v984 = vsel %vm471, %v979, 0
    %986 = vmatprep.subr.bf16.mxu0 0
    %987 = vmatpush1.bf16.msra.mxu0 %v984
    %988 = vmatprep.subr.bf16.mxu0 0
    %989 = vmatpush1.bf16.msra.mxu0 0
    %990 = vmatprep.subr.bf16.mxu0 0
    %991 = vmatpush1.bf16.msra.mxu0 0
    %992 = vmatprep.subr.bf16.mxu0 0
    %993 = vmatpush1.bf16.msra.mxu0 0
    %994 = vmatprep.subr.bf16.mxu0 0
    %995 = vmatpush1.bf16.msra.mxu0 0
    %996 = vmatprep.subr.bf16.mxu0 0
    %997 = vmatpush1.bf16.msra.mxu0 0
    %998 = vmatprep.subr.bf16.mxu0 0
    %999 = vmatpush1.bf16.msra.mxu0 0
    %1000 = vmatprep.subr.bf16.mxu0 0
    %1001 = vmatpush1.bf16.msra.mxu0 0
    %1002 = vmatprep.subr.bf16.mxu0 0
    %1003 = vmatpush1.bf16.msra.mxu0 0
    %1004 = vmatprep.subr.bf16.mxu0 0
    %1005 = vmatpush1.bf16.msra.mxu0 0
    %1006 = vmatprep.subr.bf16.mxu0 0
    %1007 = vmatpush1.bf16.msra.mxu0 0
    %1008 = vmatprep.subr.bf16.mxu0 0
    %1009 = vmatpush1.bf16.msra.mxu0 0
    %1010 = vmatprep.subr.bf16.mxu0 0
    %1011 = vmatpush1.bf16.msra.mxu0 0
    %1012 = vmatprep.subr.bf16.mxu0 0
    %1013 = vmatpush1.bf16.msra.mxu0 0
    %1014 = vmatprep.subr.bf16.mxu0 0
    %1015 = vmatpush1.bf16.msra.mxu0 0
    %1016 = vmatprep.subr.bf16.mxu0 0
    %1017 = vmatpush1.bf16.msra.mxu0 0
    %1018 = vmatprep.mubr.bf16.mxu0 0
    %1019 = vmatmul.mubr.bf16.gmra.mrb[0].mxu0 %v981
    %v1020 = vpop.f32.mrb[0].mxu0
    %v1021 = vadd.f32 0.0, %v1020
    %v1022 = vpop.f32.mrb[0].mxu0
    %v1023 = vpop.f32.mrb[0].mxu0
    %v1024 = vpop.f32.mrb[0].mxu0
    %1025 = vdwg.mxu0
    %1028 = vrot.lane.b32.xlu0 %v973, 16
    %v1029 = vpop.permute.xlu0 %1028
    %1030 = vrot.lane.b32.xlu0 %v1021, 16
    %v1031 = vpop.permute.xlu0 %1030
    %vm1034 = vcmask 195712
    %1035 = vst.msk [vmem:[#allocation2] sm:$0xff] %vm1034, %v1029
    %1036 = vst.msk [vmem:[#allocation2 + $0x8] sm:$0xff] %vm1034, %v1031
    %1037 = vrot.lane.b32.xlu0 %v343, 104
    %v1038 = vpop.permute.xlu0 %1037
    %1039 = vrot.lane.b32.xlu0 %v345, 104
    %v1040 = vpop.permute.xlu0 %1039
    %v1042 = vsel %vm349, %v1038, 0
    %v1045 = vsel %vm349, %v1040, 0
    %1047 = vmatprep.subr.bf16.mxu0 0
    %1048 = vmatpush1.bf16.xpose.msra.mxu0 %v1045
    %1049 = vmatprep.subr.bf16.mxu0 0
    %1050 = vmatpush1.bf16.xpose.msra.mxu0 0
    %1051 = vmatprep.subr.bf16.mxu0 0
    %1052 = vmatpush1.bf16.xpose.msra.mxu0 0
    %1053 = vmatprep.subr.bf16.mxu0 0
    %1054 = vmatpush1.bf16.xpose.msra.mxu0 0
    %1055 = vmatprep.subr.bf16.mxu0 0
    %1056 = vmatpush1.bf16.xpose.msra.mxu0 0
    %1057 = vmatprep.subr.bf16.mxu0 0
    %1058 = vmatpush1.bf16.xpose.msra.mxu0 0
    %1059 = vmatprep.subr.bf16.mxu0 0
    %1060 = vmatpush1.bf16.xpose.msra.mxu0 0
    %1061 = vmatprep.subr.bf16.mxu0 0
    %1062 = vmatpush1.bf16.xpose.msra.mxu0 0
    %1063 = vmatprep.subr.bf16.mxu0 0
    %1064 = vmatpush1.bf16.xpose.msra.mxu0 0
    %1065 = vmatprep.subr.bf16.mxu0 0
    %1066 = vmatpush1.bf16.xpose.msra.mxu0 0
    %1067 = vmatprep.subr.bf16.mxu0 0
    %1068 = vmatpush1.bf16.xpose.msra.mxu0 0
    %1069 = vmatprep.subr.bf16.mxu0 0
    %1070 = vmatpush1.bf16.xpose.msra.mxu0 0
    %1071 = vmatprep.subr.bf16.mxu0 0
    %1072 = vmatpush1.bf16.xpose.msra.mxu0 0
    %1073 = vmatprep.subr.bf16.mxu0 0
    %1074 = vmatpush1.bf16.xpose.msra.mxu0 0
    %1075 = vmatprep.subr.bf16.mxu0 0
    %1076 = vmatpush1.bf16.xpose.msra.mxu0 0
    %1077 = vmatprep.subr.bf16.mxu0 0
    %1078 = vmatpush1.bf16.xpose.msra.mxu0 0
    %1079 = vmatprep.mubr.bf16.mxu0 0
    %1080 = vmatmul.mubr.bf16.gmra.mrb[0].mxu0 %v1042
    %v1081 = vpop.f32.mrb[0].mxu0
    %v1082 = vadd.f32 0.0, %v1081
    %v1083 = vpop.f32.mrb[0].mxu0
    %v1084 = vpop.f32.mrb[0].mxu0
    %v1085 = vpop.f32.mrb[0].mxu0
    %1086 = vdwg.mxu0
    %1087 = vrot.lane.b32.xlu0 %v344, 104
    %v1088 = vpop.permute.xlu0 %1087
    %1089 = vrot.lane.b32.xlu0 %v346, 104
    %v1090 = vpop.permute.xlu0 %1089
    %v1092 = vsel %vm349, %v1088, 0
    %v1095 = vsel %vm349, %v1090, 0
    %1097 = vmatprep.subr.bf16.mxu0 0
    %1098 = vmatpush1.bf16.xpose.msra.mxu0 %v1095
    %1099 = vmatprep.subr.bf16.mxu0 0
    %1100 = vmatpush1.bf16.xpose.msra.mxu0 0
    %1101 = vmatprep.subr.bf16.mxu0 0
    %1102 = vmatpush1.bf16.xpose.msra.mxu0 0
    %1103 = vmatprep.subr.bf16.mxu0 0
    %1104 = vmatpush1.bf16.xpose.msra.mxu0 0
    %1105 = vmatprep.subr.bf16.mxu0 0
    %1106 = vmatpush1.bf16.xpose.msra.mxu0 0
    %1107 = vmatprep.subr.bf16.mxu0 0
    %1108 = vmatpush1.bf16.xpose.msra.mxu0 0
    %1109 = vmatprep.subr.bf16.mxu0 0
    %1110 = vmatpush1.bf16.xpose.msra.mxu0 0
    %1111 = vmatprep.subr.bf16.mxu0 0
    %1112 = vmatpush1.bf16.xpose.msra.mxu0 0
    %1113 = vmatprep.subr.bf16.mxu0 0
    %1114 = vmatpush1.bf16.xpose.msra.mxu0 0
    %1115 = vmatprep.subr.bf16.mxu0 0
    %1116 = vmatpush1.bf16.xpose.msra.mxu0 0
    %1117 = vmatprep.subr.bf16.mxu0 0
    %1118 = vmatpush1.bf16.xpose.msra.mxu0 0
    %1119 = vmatprep.subr.bf16.mxu0 0
    %1120 = vmatpush1.bf16.xpose.msra.mxu0 0
    %1121 = vmatprep.subr.bf16.mxu0 0
    %1122 = vmatpush1.bf16.xpose.msra.mxu0 0
    %1123 = vmatprep.subr.bf16.mxu0 0
    %1124 = vmatpush1.bf16.xpose.msra.mxu0 0
    %1125 = vmatprep.subr.bf16.mxu0 0
    %1126 = vmatpush1.bf16.xpose.msra.mxu0 0
    %1127 = vmatprep.subr.bf16.mxu0 0
    %1128 = vmatpush1.bf16.xpose.msra.mxu0 0
    %1129 = vmatprep.mubr.bf16.mxu0 0
    %1130 = vmatmul.mubr.bf16.gmra.mrb[0].mxu0 %v1092
    %v1131 = vpop.f32.mrb[0].mxu0
    %v1132 = vadd.f32 0.0, %v1131
    %v1133 = vpop.f32.mrb[0].mxu0
    %v1134 = vpop.f32.mrb[0].mxu0
    %v1135 = vpop.f32.mrb[0].mxu0
    %1136 = vdwg.mxu0
    %v1137 = vsel %vm349, %v1082, -inf
    %1138 = vmax.xlane.f32.xlu0 %v1137
    %v1139 = vpop.xlane.xlu0 %1138
    %v1140 = vsel %vm349, %v1132, -inf
    %1141 = vmax.xlane.f32.xlu0 %v1140
    %v1142 = vpop.xlane.xlu0 %1141
    %v1143 = vsub.f32 %v1082, %v1139
    %v1144 = vsub.f32 %v1132, %v1142
    %v1145 = vmul.f32 %v1143, 1.442695
    %v1146 = vpow.pop %v1145
    %v1147 = vmul.f32 %v1144, 1.442695
    %v1148 = vpow.pop %v1147
    %v1149 = vsel %vm349, %v1146, 0.0
    %1150 = vadd.xlane.f32.xlu0 %v1149
    %v1151 = vpop.xlane.xlu0 %1150
    %v1152 = vsel %vm349, %v1148, 0.0
    %1153 = vadd.xlane.f32.xlu0 %v1152
    %v1154 = vpop.xlane.xlu0 %1153
    %v1155 = vrcp.pop %v1151
    %v1156 = vrcp.pop %v1154
    %v1157 = vmul.f32 %v1146, %v1155
    %v1158 = vmul.f32 %v1148, %v1156
    %s1159 = scalar_lea.vmem [#allocation16], 48
    %1160 = vst.msk [vmem:[%s1159] sm:$0xff] %vm349, %v1157
    %1161 = vst.msk [vmem:[%s1159 + $0x8] sm:$0xff] %vm349, %v1158
    %v1162 = vpack.c.bf16 %v1157, %v1157
    %v1163 = vpack.c.bf16 %v1158, %v1158
    %1164 = vrot.lane.b32.xlu0 %v347, 104
    %v1165 = vpop.permute.xlu0 %1164
    %v1167 = vsel %vm349, %v1162, 0
    %v1170 = vsel %vm471, %v1165, 0
    %1172 = vmatprep.subr.bf16.mxu0 0
    %1173 = vmatpush1.bf16.msra.mxu0 %v1170
    %1174 = vmatprep.subr.bf16.mxu0 0
    %1175 = vmatpush1.bf16.msra.mxu0 0
    %1176 = vmatprep.subr.bf16.mxu0 0
    %1177 = vmatpush1.bf16.msra.mxu0 0
    %1178 = vmatprep.subr.bf16.mxu0 0
    %1179 = vmatpush1.bf16.msra.mxu0 0
    %1180 = vmatprep.subr.bf16.mxu0 0
    %1181 = vmatpush1.bf16.msra.mxu0 0
    %1182 = vmatprep.subr.bf16.mxu0 0
    %1183 = vmatpush1.bf16.msra.mxu0 0
    %1184 = vmatprep.subr.bf16.mxu0 0
    %1185 = vmatpush1.bf16.msra.mxu0 0
    %1186 = vmatprep.subr.bf16.mxu0 0
    %1187 = vmatpush1.bf16.msra.mxu0 0
    %1188 = vmatprep.subr.bf16.mxu0 0
    %1189 = vmatpush1.bf16.msra.mxu0 0
    %1190 = vmatprep.subr.bf16.mxu0 0
    %1191 = vmatpush1.bf16.msra.mxu0 0
    %1192 = vmatprep.subr.bf16.mxu0 0
    %1193 = vmatpush1.bf16.msra.mxu0 0
    %1194 = vmatprep.subr.bf16.mxu0 0
    %1195 = vmatpush1.bf16.msra.mxu0 0
    %1196 = vmatprep.subr.bf16.mxu0 0
    %1197 = vmatpush1.bf16.msra.mxu0 0
    %1198 = vmatprep.subr.bf16.mxu0 0
    %1199 = vmatpush1.bf16.msra.mxu0 0
    %1200 = vmatprep.subr.bf16.mxu0 0
    %1201 = vmatpush1.bf16.msra.mxu0 0
    %1202 = vmatprep.subr.bf16.mxu0 0
    %1203 = vmatpush1.bf16.msra.mxu0 0
    %1204 = vmatprep.mubr.bf16.mxu0 0
    %1205 = vmatmul.mubr.bf16.gmra.mrb[0].mxu0 %v1167
    %v1206 = vpop.f32.mrb[0].mxu0
    %v1207 = vadd.f32 0.0, %v1206
    %v1208 = vpop.f32.mrb[0].mxu0
    %v1209 = vpop.f32.mrb[0].mxu0
    %v1210 = vpop.f32.mrb[0].mxu0
    %1211 = vdwg.mxu0
    %1212 = vrot.lane.b32.xlu0 %v348, 104
    %v1213 = vpop.permute.xlu0 %1212
    %v1215 = vsel %vm349, %v1163, 0
    %v1218 = vsel %vm471, %v1213, 0
    %1220 = vmatprep.subr.bf16.mxu0 0
    %1221 = vmatpush1.bf16.msra.mxu0 %v1218
    %1222 = vmatprep.subr.bf16.mxu0 0
    %1223 = vmatpush1.bf16.msra.mxu0 0
    %1224 = vmatprep.subr.bf16.mxu0 0
    %1225 = vmatpush1.bf16.msra.mxu0 0
    %1226 = vmatprep.subr.bf16.mxu0 0
    %1227 = vmatpush1.bf16.msra.mxu0 0
    %1228 = vmatprep.subr.bf16.mxu0 0
    %1229 = vmatpush1.bf16.msra.mxu0 0
    %1230 = vmatprep.subr.bf16.mxu0 0
    %1231 = vmatpush1.bf16.msra.mxu0 0
    %1232 = vmatprep.subr.bf16.mxu0 0
    %1233 = vmatpush1.bf16.msra.mxu0 0
    %1234 = vmatprep.subr.bf16.mxu0 0
    %1235 = vmatpush1.bf16.msra.mxu0 0
    %1236 = vmatprep.subr.bf16.mxu0 0
    %1237 = vmatpush1.bf16.msra.mxu0 0
    %1238 = vmatprep.subr.bf16.mxu0 0
    %1239 = vmatpush1.bf16.msra.mxu0 0
    %1240 = vmatprep.subr.bf16.mxu0 0
    %1241 = vmatpush1.bf16.msra.mxu0 0
    %1242 = vmatprep.subr.bf16.mxu0 0
    %1243 = vmatpush1.bf16.msra.mxu0 0
    %1244 = vmatprep.subr.bf16.mxu0 0
    %1245 = vmatpush1.bf16.msra.mxu0 0
    %1246 = vmatprep.subr.bf16.mxu0 0
    %1247 = vmatpush1.bf16.msra.mxu0 0
    %1248 = vmatprep.subr.bf16.mxu0 0
    %1249 = vmatpush1.bf16.msra.mxu0 0
    %1250 = vmatprep.subr.bf16.mxu0 0
    %1251 = vmatpush1.bf16.msra.mxu0 0
    %1252 = vmatprep.mubr.bf16.mxu0 0
    %1253 = vmatmul.mubr.bf16.gmra.mrb[0].mxu0 %v1215
    %v1254 = vpop.f32.mrb[0].mxu0
    %v1255 = vadd.f32 0.0, %v1254
    %v1256 = vpop.f32.mrb[0].mxu0
    %v1257 = vpop.f32.mrb[0].mxu0
    %v1258 = vpop.f32.mrb[0].mxu0
    %1259 = vdwg.mxu0
    %1262 = vrot.lane.b32.xlu0 %v1207, 24
    %v1263 = vpop.permute.xlu0 %1262
    %1264 = vrot.lane.b32.xlu0 %v1255, 24
    %v1265 = vpop.permute.xlu0 %1264
    %vm1268 = vcmask 261312
    %1269 = vst.msk [vmem:[#allocation2] sm:$0xff] %vm1268, %v1263
    %1270 = vst.msk [vmem:[#allocation2 + $0x8] sm:$0xff] %vm1268, %v1265
    %v1271 = vld [vmem:[%s10] sm:$0x1]
    %v1272 = vld [vmem:[%s11] sm:$0x1]
    %v1273 = vld [vmem:[#allocation2] sm:$0xff]
    %v1274 = vld [vmem:[#allocation2 + $0x8] sm:$0xff]
    %v1275 = vunpack.c.l.bf16 %v141
    %v1276 = vunpack.c.l.bf16 %v142
    %v1277 = vadd.f32 %v1273, %v1275
    %v1278 = vadd.f32 %v1274, %v1276
    %v1279 = vsel %vm168, %v1277, 0.0
    %1280 = vadd.xlane.f32.xlu0 %v1279
    %v1281 = vpop.xlane.xlu0 %1280
    %v1282 = vsel %vm168, %v1278, 0.0
    %1283 = vadd.xlane.f32.xlu0 %v1282
    %v1284 = vpop.xlane.xlu0 %1283
    %v1285 = vrcp.pop 32.0
    %v1286 = vmul.f32 %v1281, %v1285
    %v1287 = vmul.f32 %v1284, %v1285
    %v1288 = vsub.f32 %v1277, %v1286
    %v1289 = vsub.f32 %v1278, %v1287
    %v1290 = vmul.f32 %v1288, %v1288
    %v1291 = vmul.f32 %v1289, %v1289
    %v1292 = vsel %vm168, %v1290, 0.0
    %1293 = vadd.xlane.f32.xlu0 %v1292
    %v1294 = vpop.xlane.xlu0 %1293
    %v1295 = vsel %vm168, %v1291, 0.0
    %1296 = vadd.xlane.f32.xlu0 %v1295
    %v1297 = vpop.xlane.xlu0 %1296
    %v1298 = vmul.f32 %v1294, %v1285
    %v1299 = vmul.f32 %v1297, %v1285
    %v1300 = vadd.f32 %v1298, 1e-05
    %v1301 = vadd.f32 %v1299, 1e-05
    %v1302 = vrsqrt.pop %v1300
    %v1303 = vrsqrt.pop %v1301
    %v1304 = vmul.f32 %v1288, %v1302
    %v1305 = vmul.f32 %v1289, %v1303
    %v1307 = vlaneseq
    %v1308 = vshrl.u32 %v1307, 7
    %v1309 = vsub.s32 0, %v1308
    %v1310 = vrot.slane %v1271, %v1309
    %v1312 = vmul.f32 %v1304, %v1310
    %v1313 = vmul.f32 %v1305, %v1310
    %v1315 = vlaneseq
    %v1316 = vshrl.u32 %v1315, 7
    %v1317 = vsub.s32 0, %v1316
    %v1318 = vrot.slane %v1272, %v1317
    %v1320 = vadd.f32 %v1312, %v1318
    %v1321 = vadd.f32 %v1313, %v1318
    %v1322 = vpack.c.bf16 %v1321, %v1320
    %v1323 = vld [vmem:[#allocation12] sm:$0xf]
    %v1324 = vld [vmem:[#allocation12 + $0x4] sm:$0xf]
    %v1325 = vld [vmem:[#allocation12 + $0x8] sm:$0xf]
    %v1326 = vld [vmem:[#allocation12 + $0xc] sm:$0xf]
    %v1327 = vld [vmem:[%s7] sm:$0x1]
    %v1329 = vlaneseq
    %v1330 = vshrl.u32 %v1329, 7
    %v1331 = vsub.s32 0, %v1330
    %v1332 = vrot.slane %v1327, %v1331
    %v1338 = vunpack.c.l.b16 %v1323
    %v1339 = vunpack.c.l.b16 %v1324
    %v1340 = vunpack.c.l.b16 %v1325
    %v1341 = vunpack.c.l.b16 %v1326
    %v1342 = vpack.c.b16 %v1339, %v1338
    %v1343 = vpack.c.b16 %v1341, %v1340
    %v1347 = vsel %vm168, %v1322, 0
    %1349 = vmatprep.subr.bf16.mxu0 0
    %1350 = vmatpush1.bf16.msra.mxu0 %v1342
    %1351 = vmatprep.subr.bf16.mxu0 0
    %1352 = vmatpush1.bf16.msra.mxu0 %v1343
    %1353 = vmatprep.subr.bf16.mxu0 0
    %1354 = vmatpush1.bf16.msra.mxu0 0
    %1355 = vmatprep.subr.bf16.mxu0 0
    %1356 = vmatpush1.bf16.msra.mxu0 0
    %1357 = vmatprep.subr.bf16.mxu0 0
    %1358 = vmatpush1.bf16.msra.mxu0 0
    %1359 = vmatprep.subr.bf16.mxu0 0
    %1360 = vmatpush1.bf16.msra.mxu0 0
    %1361 = vmatprep.subr.bf16.mxu0 0
    %1362 = vmatpush1.bf16.msra.mxu0 0
    %1363 = vmatprep.subr.bf16.mxu0 0
    %1364 = vmatpush1.bf16.msra.mxu0 0
    %1365 = vmatprep.subr.bf16.mxu0 0
    %1366 = vmatpush1.bf16.msra.mxu0 0
    %1367 = vmatprep.subr.bf16.mxu0 0
    %1368 = vmatpush1.bf16.msra.mxu0 0
    %1369 = vmatprep.subr.bf16.mxu0 0
    %1370 = vmatpush1.bf16.msra.mxu0 0
    %1371 = vmatprep.subr.bf16.mxu0 0
    %1372 = vmatpush1.bf16.msra.mxu0 0
    %1373 = vmatprep.subr.bf16.mxu0 0
    %1374 = vmatpush1.bf16.msra.mxu0 0
    %1375 = vmatprep.subr.bf16.mxu0 0
    %1376 = vmatpush1.bf16.msra.mxu0 0
    %1377 = vmatprep.subr.bf16.mxu0 0
    %1378 = vmatpush1.bf16.msra.mxu0 0
    %1379 = vmatprep.subr.bf16.mxu0 0
    %1380 = vmatpush1.bf16.msra.mxu0 0
    %1381 = vmatprep.mubr.bf16.mxu0 0
    %1382 = vmatmul.mubr.bf16.gmra.mrb[0].mxu0 %v1347
    %v1383 = vpop.f32.mrb[0].mxu0
    %v1384 = vadd.f32 %v1332, %v1383
    %v1385 = vpop.f32.mrb[0].mxu0
    %v1386 = vpop.f32.mrb[0].mxu0
    %v1387 = vadd.f32 %v1332, %v1386
    %v1388 = vpop.f32.mrb[0].mxu0
    %1389 = vdwg.mxu0
    %v1390 = vmax.f32 %v1384, 0.0
    %v1391 = vmax.f32 %v1387, 0.0
    %v1392 = vpack.c.bf16 %v1391, %v1390
    %v1393 = vld [vmem:[#allocation14] sm:$0xf]
    %v1394 = vld [vmem:[#allocation14 + $0x4] sm:$0xf]
    %v1395 = vld [vmem:[#allocation14 + $0x8] sm:$0xf]
    %v1396 = vld [vmem:[#allocation14 + $0xc] sm:$0xf]
    %v1397 = vld [vmem:[%s9] sm:$0x1]
    %v1399 = vlaneseq
    %v1400 = vshrl.u32 %v1399, 7
    %v1401 = vsub.s32 0, %v1400
    %v1402 = vrot.slane %v1397, %v1401
    %v1408 = vunpack.c.l.b16 %v1393
    %v1409 = vunpack.c.l.b16 %v1394
    %v1410 = vunpack.c.l.b16 %v1395
    %v1411 = vunpack.c.l.b16 %v1396
    %v1412 = vpack.c.b16 %v1409, %v1408
    %v1413 = vpack.c.b16 %v1411, %v1410
    %v1417 = vsel %vm168, %v1392, 0
    %1419 = vmatprep.subr.bf16.mxu0 0
    %1420 = vmatpush1.bf16.msra.mxu0 %v1412
    %1421 = vmatprep.subr.bf16.mxu0 0
    %1422 = vmatpush1.bf16.msra.mxu0 %v1413
    %1423 = vmatprep.subr.bf16.mxu0 0
    %1424 = vmatpush1.bf16.msra.mxu0 0
    %1425 = vmatprep.subr.bf16.mxu0 0
    %1426 = vmatpush1.bf16.msra.mxu0 0
    %1427 = vmatprep.subr.bf16.mxu0 0
    %1428 = vmatpush1.bf16.msra.mxu0 0
    %1429 = vmatprep.subr.bf16.mxu0 0
    %1430 = vmatpush1.bf16.msra.mxu0 0
    %1431 = vmatprep.subr.bf16.mxu0 0
    %1432 = vmatpush1.bf16.msra.mxu0 0
    %1433 = vmatprep.subr.bf16.mxu0 0
    %1434 = vmatpush1.bf16.msra.mxu0 0
    %1435 = vmatprep.subr.bf16.mxu0 0
    %1436 = vmatpush1.bf16.msra.mxu0 0
    %1437 = vmatprep.subr.bf16.mxu0 0
    %1438 = vmatpush1.bf16.msra.mxu0 0
    %1439 = vmatprep.subr.bf16.mxu0 0
    %1440 = vmatpush1.bf16.msra.mxu0 0
    %1441 = vmatprep.subr.bf16.mxu0 0
    %1442 = vmatpush1.bf16.msra.mxu0 0
    %1443 = vmatprep.subr.bf16.mxu0 0
    %1444 = vmatpush1.bf16.msra.mxu0 0
    %1445 = vmatprep.subr.bf16.mxu0 0
    %1446 = vmatpush1.bf16.msra.mxu0 0
    %1447 = vmatprep.subr.bf16.mxu0 0
    %1448 = vmatpush1.bf16.msra.mxu0 0
    %1449 = vmatprep.subr.bf16.mxu0 0
    %1450 = vmatpush1.bf16.msra.mxu0 0
    %1451 = vmatprep.mubr.bf16.mxu0 0
    %1452 = vmatmul.mubr.bf16.gmra.mrb[0].mxu0 %v1417
    %v1453 = vpop.f32.mrb[0].mxu0
    %v1454 = vadd.f32 %v1402, %v1453
    %v1455 = vpop.f32.mrb[0].mxu0
    %v1456 = vpop.f32.mrb[0].mxu0
    %v1457 = vadd.f32 %v1402, %v1456
    %v1458 = vpop.f32.mrb[0].mxu0
    %1459 = vdwg.mxu0
    %v1460 = vadd.f32 %v1454, %v1320
    %v1461 = vadd.f32 %v1457, %v1321
    %v1462 = vsel %vm168, %v1460, 0.0
    %1463 = vadd.xlane.f32.xlu0 %v1462
    %v1464 = vpop.xlane.xlu0 %1463
    %v1465 = vsel %vm168, %v1461, 0.0
    %1466 = vadd.xlane.f32.xlu0 %v1465
    %v1467 = vpop.xlane.xlu0 %1466
    %v1468 = vmul.f32 %v1464, %v1285
    %v1469 = vmul.f32 %v1467, %v1285
    %v1470 = vsub.f32 %v1460, %v1468
    %v1471 = vsub.f32 %v1461, %v1469
    %v1472 = vmul.f32 %v1470, %v1470
    %v1473 = vmul.f32 %v1471, %v1471
    %v1474 = vsel %vm168, %v1472, 0.0
    %1475 = vadd.xlane.f32.xlu0 %v1474
    %v1476 = vpop.xlane.xlu0 %1475
    %v1477 = vsel %vm168, %v1473, 0.0
    %1478 = vadd.xlane.f32.xlu0 %v1477
    %v1479 = vpop.xlane.xlu0 %1478
    %v1480 = vmul.f32 %v1476, %v1285
    %v1481 = vmul.f32 %v1479, %v1285
    %v1482 = vadd.f32 %v1480, 1e-05
    %v1483 = vadd.f32 %v1481, 1e-05
    %v1484 = vrsqrt.pop %v1482
    %v1485 = vrsqrt.pop %v1483
    %v1486 = vmul.f32 %v1470, %v1484
    %v1487 = vmul.f32 %v1471, %v1485
    %v1488 = vmul.f32 %v1486, %v1310
    %v1489 = vmul.f32 %v1487, %v1310
    %v1490 = vadd.f32 %v1488, %v1318
    %v1491 = vadd.f32 %v1489, %v1318
    %1492 = vst.msk [vmem:[#allocation15] sm:$0xff] %vm168, %v1490
    %1493 = vst.msk [vmem:[#allocation15 + $0x8] sm:$0xff] %vm168, %v1491
    // Predicated region
    $region78: #{tpu_custom_call.1} parent=1 // pred_check
      _
    $region79: #{tpu_custom_call.1} parent=1 // pred_check_branch
      %1495 = sbr.rel (0) target = $region81
    $region80: #{tpu_custom_call.1} parent=1 // pred_region
      %s1497 = ssub.s32 256, 256
      %1498 = vsyncadd [#allocation5], %s1497
      %s1499 = sshll.u32 [#allocation15], 4
      %s1500 = int_to_ptr.vmem [resolvable:$true] %s1499
      %1505 = dma.vmem_to_hbm [thread:$0]  %s1500, 256, %s12, [#allocation5], 128, 128, 8
    $region81: #{tpu_custom_call.1} parent=1 // pred_fallthru
      _
    // Predicated region
    $region82: #{tpu_custom_call.1} parent=1 // pred_check
      _
    $region83: #{tpu_custom_call.1} parent=1 // pred_check_branch
      %1507 = sbr.rel (0) target = $region85
    $region84: #{tpu_custom_call.1} parent=1 // pred_region
      %s1509 = ssub.s32 1024, 1024
      %1510 = vsyncadd [#allocation17], %s1509
      %s1511 = sshll.u32 [#allocation16], 4
      %s1512 = int_to_ptr.vmem [resolvable:$true] %s1511
      %1517 = dma.vmem_to_hbm [thread:$0]  %s1512, 1024, %s13, [#allocation17], 128, 128, 8
    $region85: #{tpu_custom_call.1} parent=1 // pred_fallthru
      _
    // Predicated region
    $region86: #{tpu_custom_call.1} parent=1 // pred_check
      _
    $region87: #{tpu_custom_call.1} parent=1 // pred_check_branch
      %1519 = sbr.rel (0) target = $region89
    $region88: #{tpu_custom_call.1} parent=1 // pred_region
      %1520 = dma.done [#allocation5], 256
    $region89: #{tpu_custom_call.1} parent=1 // pred_fallthru
      _
    // Predicated region
    $region90: #{tpu_custom_call.1} parent=1 // pred_check
      _
    $region91: #{tpu_custom_call.1} parent=1 // pred_check_branch
      %1522 = sbr.rel (0) target = $region93
    $region92: #{tpu_custom_call.1} parent=1 // pred_region
      %1523 = dma.done [#allocation17], 1024
    $region93: #{tpu_custom_call.1} parent=1 // pred_fallthru
      _
    %1524 = vsyncpa [#allocation4], 1
    %1525 = vsyncpa [#allocation7], 1
    %1526 = vsyncpa [#allocation10], 1
    %1527 = vsyncpa [#allocation13], 1
    %1528 = vsyncpa [#allocation5], 1
    %1529 = vsyncpa [#allocation17], 1

</llo_original>
